<compile_context>
chip_gen: v5e
topology: v5e:2x2
jax: 0.10.0
libtpu: 0.0.40
codegen_flags: <defaults>
</compile_context>

<pallas_src>
import functools
import math

import jax
import jax.numpy as jnp
from jax import lax
from jax.experimental import pallas as pl
from jax.experimental.pallas import tpu as pltpu


_VMEM_SPEC = functools.partial(pl.BlockSpec, memory_space=pltpu.MemorySpace.VMEM)


# ----------------------------- Pallas kernels -----------------------------

def _embed_kernel(src_ref, w_ref, b_ref, pe_ref, o_ref, *, scale):
    """out[r, :] = (src[r] * w + b) * sqrt(d_model) + pe_row[r]  — pure VPU, no MXU."""
    o_ref[...] = (src_ref[...] * w_ref[...] + b_ref[...]) * scale + pe_ref[...]


def _layer_norm(x, w, b, eps):
    mean = jnp.mean(x, axis=-1, keepdims=True)
    xc = x - mean
    var = jnp.mean(xc * xc, axis=-1, keepdims=True)
    return xc * lax.rsqrt(var + eps) * w + b


def _encoder_layer_kernel(x_ref, qkv_w_ref, qkv_b_ref, out_w_ref, out_b_ref,
                          n1_w_ref, n1_b_ref, ff1_w_ref, ff1_b_ref,
                          ff2_w_ref, ff2_b_ref, n2_w_ref, n2_b_ref,
                          fn_w_ref, fn_b_ref, o_ref,
                          *, nhead, batch, apply_final_norm, eps):
    """One full post-LN transformer encoder layer on a (S*B, D) activation tile.

    Row r of the activation corresponds to token (s = r // batch, b = r % batch),
    i.e. the flattened (S, B, D) layout used by PyTorch's batch_first=False path.
    """
    x = x_ref[...]                                   # (SB, D)
    sb, d = x.shape
    dh = d // nhead
    scale = 1.0 / math.sqrt(dh)

    # --- fused Q/K/V projection: one (SB, D) @ (D, 3D) GEMM ---
    qkv = jnp.dot(x, qkv_w_ref[...], preferred_element_type=jnp.float32) + qkv_b_ref[...]

    # Rows belonging to different batch elements must not attend to each other.
    # A mask over the (SB, SB) score matrix replaces the per-(batch, head) grid.
    row = lax.broadcasted_iota(jnp.int32, (sb, sb), 0)
    col = lax.broadcasted_iota(jnp.int32, (sb, sb), 1)
    same_batch = (row % batch) == (col % batch)

    attn = out_b_ref[...]                            # (1, D); broadcasts on first add
    for h in range(nhead):                           # static unroll, all in one call
        q = qkv[:, h * dh:(h + 1) * dh]
        k = qkv[:, d + h * dh:d + (h + 1) * dh]
        v = qkv[:, 2 * d + h * dh:2 * d + (h + 1) * dh]
        s = lax.dot_general(q, k, (((1,), (1,)), ((), ())),
                            preferred_element_type=jnp.float32) * scale
        s = jnp.where(same_batch, s, -1e30)
        m = jnp.max(s, axis=-1, keepdims=True)
        p = jnp.exp(s - m)
        p = p * pl.reciprocal(jnp.sum(p, axis=-1, keepdims=True), approx=True)
        o_h = jnp.dot(p, v, preferred_element_type=jnp.float32)          # (SB, dh)
        # concat(heads) @ W_out  ==  sum_h head_h @ W_out[h*dh:(h+1)*dh, :]
        attn = attn + jnp.dot(o_h, out_w_ref[h * dh:(h + 1) * dh, :],
                              preferred_element_type=jnp.float32)

    y = _layer_norm(x + attn, n1_w_ref[...], n1_b_ref[...], eps)

    # --- fused feed-forward: linear1 + ReLU + linear2 (intermediate stays in VMEM) ---
    h1 = jnp.dot(y, ff1_w_ref[...], preferred_element_type=jnp.float32) + ff1_b_ref[...]
    h1 = jnp.maximum(h1, 0.0)
    h2 = jnp.dot(h1, ff2_w_ref[...], preferred_element_type=jnp.float32) + ff2_b_ref[...]

    z = _layer_norm(y + h2, n2_w_ref[...], n2_b_ref[...], eps)
    if apply_final_norm:                             # final encoder LayerNorm folded in
        z = _layer_norm(z, fn_w_ref[...], fn_b_ref[...], eps)
    o_ref[...] = z


# ------------------------------ wrappers ------------------------------

def pulse_embed(src, w, b, pe, d_model):
    """Linear(1, d_model) + sqrt(d) scale + positional encoding, in one VPU kernel.

    Returns the activation already flattened as (S*B, D) with row = s*B + b.
    """
    bsz, seq = src.shape
    src_col = src.T.reshape(seq * bsz, 1).astype(jnp.float32)          # row s*B+b -> src[b, s]
    pe_rows = jnp.tile(pe[:bsz, 0, :], (seq, 1)).astype(jnp.float32)   # row s*B+b -> pe[b]  (module quirk)
    return pl.pallas_call(
        functools.partial(_embed_kernel, scale=math.sqrt(d_model)),
        out_shape=jax.ShapeDtypeStruct((seq * bsz, d_model), jnp.float32),
        in_specs=[_VMEM_SPEC()] * 4,
        out_specs=_VMEM_SPEC(),
    )(src_col, w.reshape(1, d_model).astype(jnp.float32),
      b.reshape(1, d_model).astype(jnp.float32), pe_rows)


def encoder_layer(x_flat, lp, final_norm, *, nhead, batch, apply_final_norm):
    """One fused transformer encoder layer (single pallas_call)."""
    sb, d = x_flat.shape
    row = lambda v: v.reshape(1, -1).astype(jnp.float32)
    ins = (x_flat,
           lp["in_w"].T.astype(jnp.float32), row(lp["in_b"]),       # (D, 3D), (1, 3D)
           lp["out_w"].T.astype(jnp.float32), row(lp["out_b"]),     # (D, D),  (1, D)
           row(lp["norm1"][0]), row(lp["norm1"][1]),
           lp["linear1_w"].T.astype(jnp.float32), row(lp["linear1_b"]),
           lp["linear2_w"].T.astype(jnp.float32), row(lp["linear2_b"]),
           row(lp["norm2"][0]), row(lp["norm2"][1]),
           row(final_norm[0]), row(final_norm[1]))
    return pl.pallas_call(
        functools.partial(_encoder_layer_kernel, nhead=nhead, batch=batch,
                          apply_final_norm=apply_final_norm, eps=1e-5),
        out_shape=jax.ShapeDtypeStruct((sb, d), jnp.float32),
        in_specs=[_VMEM_SPEC()] * len(ins),
        out_specs=_VMEM_SPEC(),
    )(*ins)


def pulse_encoder_forward(src, params, cfg):
    """PulseEncoder.forward: src (B, S) -> latent (S, B, d_model)."""
    b, s = src.shape
    d = cfg["d_model"]
    x = pulse_embed(src, params["enc_in_w"], params["enc_in_b"], params["pe"], d)  # (S*B, D)
    n_layers = len(params["enc_layers"])
    for li, lp in enumerate(params["enc_layers"]):
        x = encoder_layer(x, lp, params["enc_norm"], nhead=cfg["nhead"], batch=b,
                          apply_final_norm=(li == n_layers - 1))
    return x.reshape(s, b, d)                        # batch_first=False layout


# -------------------------- pure-JAX reference --------------------------

def pulse_encoder_reference(src, params, cfg):
    b, s = src.shape
    d, nh = cfg["d_model"], cfg["nhead"]
    dh = d // nh

    x = src[..., None] * params["enc_in_w"].reshape(1, 1, d) + params["enc_in_b"]
    x = x * math.sqrt(d)
    x = x + params["pe"][:b]                         # (b,1,d) broadcast over seq (quirk)
    x = jnp.transpose(x, (1, 0, 2))                  # (S, B, D)

    def ln(t, w, bb):
        m = t.mean(-1, keepdims=True)
        v = ((t - m) ** 2).mean(-1, keepdims=True)
        return (t - m) / jnp.sqrt(v + 1e-5) * w + bb

    for lp in params["enc_layers"]:
        q = x @ lp["in_w"][:d].T + lp["in_b"][:d]
        k = x @ lp["in_w"][d:2 * d].T + lp["in_b"][d:2 * d]
        v = x @ lp["in_w"][2 * d:].T + lp["in_b"][2 * d:]

        def heads(t):                                # (S,B,D) -> (B,H,S,dh)
            return t.reshape(s, b, nh, dh).transpose(1, 2, 0, 3)

        qh, kh, vh = heads(q), heads(k), heads(v)
        sc = jnp.einsum("bhqe,bhke->bhqk", qh, kh) / math.sqrt(dh)
        p = jax.nn.softmax(sc, axis=-1)
        o = jnp.einsum("bhqk,bhke->bhqe", p, vh).transpose(2, 0, 1, 3).reshape(s, b, d)
        o = o @ lp["out_w"].T + lp["out_b"]
        x = ln(x + o, *lp["norm1"])
        h1 = jax.nn.relu(x @ lp["linear1_w"].T + lp["linear1_b"])
        h2 = h1 @ lp["linear2_w"].T + lp["linear2_b"]
        x = ln(x + h2, *lp["norm2"])
    return ln(x, *params["enc_norm"])


# ------------------------- deterministic parameters -------------------------

class KeyGen:
    def __init__(self, seed):
        self._key = jax.random.PRNGKey(seed)

    def __call__(self):
        self._key, sub = jax.random.split(self._key)
        return sub


def _dense(key, shape, scale=0.05):
    return scale * jax.random.normal(key, shape, dtype=jnp.float32)


def _init_norm(d):
    return (jnp.ones((d,), jnp.float32), jnp.zeros((d,), jnp.float32))


def _init_enc_layer(kg, d, ff):
    return {"in_w": _dense(kg(), (3 * d, d)), "in_b": _dense(kg(), (3 * d,)),
            "out_w": _dense(kg(), (d, d)), "out_b": _dense(kg(), (d,)),
            "linear1_w": _dense(kg(), (ff, d)), "linear1_b": _dense(kg(), (ff,)),
            "linear2_w": _dense(kg(), (d, ff)), "linear2_b": _dense(kg(), (d,)),
            "norm1": _init_norm(d), "norm2": _init_norm(d)}


def make_positional_encoding(d_model, max_len=64):
    position = jnp.arange(max_len, dtype=jnp.float32)[:, None]
    div_term = jnp.exp(jnp.arange(0, d_model, 2, dtype=jnp.float32) *
                       (-math.log(10000.0) / d_model))
    pe = jnp.zeros((max_len, d_model), dtype=jnp.float32)
    pe = pe.at[:, 0::2].set(jnp.sin(position * div_term))
    pe = pe.at[:, 1::2].set(jnp.cos(position * div_term))
    return pe[:, None, :]                            # (max_len, 1, d_model)


def init_params(kg, cfg):
    d, ff = cfg["d_model"], cfg["dim_feedforward"]
    return {
        "enc_in_w": _dense(kg(), (d, 1)), "enc_in_b": _dense(kg(), (d,)),
        "pe": make_positional_encoding(d),
        "enc_layers": [_init_enc_layer(kg, d, ff)
                       for _ in range(cfg["num_encoder_layers"])],
        "enc_norm": _init_norm(d),
    }


# ----------------------------------- main -----------------------------------

if __name__ == "__main__":
    # num_decoder_layers / dropout mirror the module signature; the decoder is never
    # used in PulseEncoder.forward and dropout is identity at inference.
    cfg = dict(d_model=32, nhead=4, num_encoder_layers=2, num_decoder_layers=2,
               dim_feedforward=64, dropout=0.1)

    kg = KeyGen(0)                                   # jax.random.PRNGKey(0) root
    params = init_params(kg, cfg)

    batch, seq = 2, 8
    src = jax.random.normal(kg(), (batch, seq), dtype=jnp.float32)

    fwd = jax.jit(functools.partial(pulse_encoder_forward, params=params, cfg=cfg))
    latent = fwd(src)
    jax.block_until_ready(latent)

    assert latent.shape == (seq, batch, cfg["d_model"])
    assert bool(jnp.all(jnp.isfinite(latent)))

    ref = pulse_encoder_reference(src, params, cfg)
    max_err = float(jnp.max(jnp.abs(latent - ref)))
    assert jnp.allclose(latent, ref, rtol=2e-2, atol=2e-2), f"max|diff|={max_err}"

    print("KERNEL_OK")
</pallas_src>

<mosaic_0001>
module attributes {stable_mosaic.version = 11 : i64} {
  func.func @_embed_kernel(%arg0: memref<16x1xf32, #tpu.memory_space<vmem>>, %arg1: memref<1x32xf32, #tpu.memory_space<vmem>>, %arg2: memref<1x32xf32, #tpu.memory_space<vmem>>, %arg3: memref<16x32xf32, #tpu.memory_space<vmem>>, %arg4: memref<16x32xf32, #tpu.memory_space<vmem>>) attributes {dimension_semantics = [], scalar_prefetch = 0 : i64, scratch_operands = 0 : i64, tpu.core_type = #tpu.core_type<tc>} {
    %c0 = arith.constant 0 : index
    %c0_0 = arith.constant 0 : index
    %0 = vector.load %arg0[%c0, %c0_0] : memref<16x1xf32, #tpu.memory_space<vmem>>, vector<16x1xf32>
    %c0_1 = arith.constant 0 : index
    %c0_2 = arith.constant 0 : index
    %1 = vector.load %arg1[%c0_1, %c0_2] : memref<1x32xf32, #tpu.memory_space<vmem>>, vector<1x32xf32>
    %2 = vector.broadcast %0 : vector<16x1xf32> to vector<16x32xf32>
    %3 = vector.broadcast %1 : vector<1x32xf32> to vector<16x32xf32>
    %4 = arith.mulf %2, %3 : vector<16x32xf32>
    %c0_3 = arith.constant 0 : index
    %c0_4 = arith.constant 0 : index
    %5 = vector.load %arg2[%c0_3, %c0_4] : memref<1x32xf32, #tpu.memory_space<vmem>>, vector<1x32xf32>
    %6 = vector.broadcast %5 : vector<1x32xf32> to vector<16x32xf32>
    %7 = arith.addf %4, %6 : vector<16x32xf32>
    %cst = arith.constant 5.65685415 : f32
    %8 = vector.broadcast %cst : f32 to vector<16x32xf32>
    %9 = arith.mulf %7, %8 : vector<16x32xf32>
    %c0_5 = arith.constant 0 : index
    %c0_6 = arith.constant 0 : index
    %10 = vector.load %arg3[%c0_5, %c0_6] : memref<16x32xf32, #tpu.memory_space<vmem>>, vector<16x32xf32>
    %11 = arith.addf %9, %10 : vector<16x32xf32>
    %c0_7 = arith.constant 0 : index
    %c0_8 = arith.constant 0 : index
    %12 = vector.load %arg4[%c0_7, %c0_8] : memref<16x32xf32, #tpu.memory_space<vmem>>, vector<16x32xf32>
    tpu.vector_store %arg4[%c0_7, %c0_8], %11 {strides = array<i32>} : memref<16x32xf32, #tpu.memory_space<vmem>>, vector<16x32xf32>,
    return
  }
}

module attributes {stable_mosaic.version = 11 : i64} {
  func.func @_encoder_layer_kernel(%arg0: memref<16x32xf32, #tpu.memory_space<vmem>>, %arg1: memref<32x96xf32, #tpu.memory_space<vmem>>, %arg2: memref<1x96xf32, #tpu.memory_space<vmem>>, %arg3: memref<32x32xf32, #tpu.memory_space<vmem>>, %arg4: memref<1x32xf32, #tpu.memory_space<vmem>>, %arg5: memref<1x32xf32, #tpu.memory_space<vmem>>, %arg6: memref<1x32xf32, #tpu.memory_space<vmem>>, %arg7: memref<32x64xf32, #tpu.memory_space<vmem>>, %arg8: memref<1x64xf32, #tpu.memory_space<vmem>>, %arg9: memref<64x32xf32, #tpu.memory_space<vmem>>, %arg10: memref<1x32xf32, #tpu.memory_space<vmem>>, %arg11: memref<1x32xf32, #tpu.memory_space<vmem>>, %arg12: memref<1x32xf32, #tpu.memory_space<vmem>>, %arg13: memref<1x32xf32, #tpu.memory_space<vmem>>, %arg14: memref<1x32xf32, #tpu.memory_space<vmem>>, %arg15: memref<16x32xf32, #tpu.memory_space<vmem>>) attributes {dimension_semantics = [], scalar_prefetch = 0 : i64, scratch_operands = 0 : i64, tpu.core_type = #tpu.core_type<tc>} {
    %c0 = arith.constant 0 : index
    %c0_0 = arith.constant 0 : index
    %0 = vector.load %arg0[%c0, %c0_0] : memref<16x32xf32, #tpu.memory_space<vmem>>, vector<16x32xf32>
    %c0_1 = arith.constant 0 : index
    %c0_2 = arith.constant 0 : index
    %1 = vector.load %arg1[%c0_1, %c0_2] : memref<32x96xf32, #tpu.memory_space<vmem>>, vector<32x96xf32>
    %cst = arith.constant dense<0.000000e+00> : vector<16x96xf32>
    %2 = tpu.matmul %0, %1, %cst {dimension_numbers = #tpu.dot_dimension_numbers<[1], [0], [0], [1], [0, 0, 1, 1], [], []>} : vector<16x32xf32>, vector<32x96xf32>, vector<16x96xf32> -> vector<16x96xf32>
    %c0_3 = arith.constant 0 : index
    %c0_4 = arith.constant 0 : index
    %3 = vector.load %arg2[%c0_3, %c0_4] : memref<1x96xf32, #tpu.memory_space<vmem>>, vector<1x96xf32>
    %4 = vector.broadcast %3 : vector<1x96xf32> to vector<16x96xf32>
    %5 = arith.addf %2, %4 : vector<16x96xf32>
    %6 = tpu.iota {dimensions = array<i32: 0>} : vector<16x16xi32>
    %7 = tpu.iota {dimensions = array<i32: 1>} : vector<16x16xi32>
    %c2_i32 = arith.constant 2 : i32
    %c0_i32 = arith.constant 0 : i32
    %8 = arith.cmpi eq, %c2_i32, %c0_i32 : i32
    %c1_i32 = arith.constant 1 : i32
    %9 = arith.select %8, %c1_i32, %c2_i32 : i32
    %10 = vector.broadcast %9 : i32 to vector<16x16xi32>
    %11 = arith.remsi %6, %10 : vector<16x16xi32>
    %c0_i32_5 = arith.constant 0 : i32
    %12 = vector.broadcast %c0_i32_5 : i32 to vector<16x16xi32>
    %13 = arith.cmpi ne, %11, %12 : vector<16x16xi32>
    %c0_i32_6 = arith.constant 0 : i32
    %14 = vector.broadcast %c0_i32_6 : i32 to vector<16x16xi32>
    %15 = arith.cmpi slt, %11, %14 : vector<16x16xi32>
    %c0_i32_7 = arith.constant 0 : i32
    %16 = arith.cmpi slt, %9, %c0_i32_7 : i32
    %17 = vector.broadcast %16 : i1 to vector<16x16xi1>
    %18 = vector.broadcast %17 : vector<16x16xi1> to vector<16x16xi1>
    %19 = arith.xori %15, %18 : vector<16x16xi1>
    %20 = arith.andi %19, %13 : vector<16x16xi1>
    %21 = vector.broadcast %9 : i32 to vector<16x16xi32>
    %22 = arith.addi %11, %21 : vector<16x16xi32>
    %23 = arith.select %20, %22, %11 : vector<16x16xi1>, vector<16x16xi32>
    %c2_i32_8 = arith.constant 2 : i32
    %c0_i32_9 = arith.constant 0 : i32
    %24 = arith.cmpi eq, %c2_i32_8, %c0_i32_9 : i32
    %c1_i32_10 = arith.constant 1 : i32
    %25 = arith.select %24, %c1_i32_10, %c2_i32_8 : i32
    %26 = vector.broadcast %25 : i32 to vector<16x16xi32>
    %27 = arith.remsi %7, %26 : vector<16x16xi32>
    %c0_i32_11 = arith.constant 0 : i32
    %28 = vector.broadcast %c0_i32_11 : i32 to vector<16x16xi32>
    %29 = arith.cmpi ne, %27, %28 : vector<16x16xi32>
    %c0_i32_12 = arith.constant 0 : i32
    %30 = vector.broadcast %c0_i32_12 : i32 to vector<16x16xi32>
    %31 = arith.cmpi slt, %27, %30 : vector<16x16xi32>
    %c0_i32_13 = arith.constant 0 : i32
    %32 = arith.cmpi slt, %25, %c0_i32_13 : i32
    %33 = vector.broadcast %32 : i1 to vector<16x16xi1>
    %34 = vector.broadcast %33 : vector<16x16xi1> to vector<16x16xi1>
    %35 = arith.xori %31, %34 : vector<16x16xi1>
    %36 = arith.andi %35, %29 : vector<16x16xi1>
    %37 = vector.broadcast %25 : i32 to vector<16x16xi32>
    %38 = arith.addi %27, %37 : vector<16x16xi32>
    %39 = arith.select %36, %38, %27 : vector<16x16xi1>, vector<16x16xi32>
    %40 = arith.cmpi eq, %23, %39 : vector<16x16xi32>
    %c0_14 = arith.constant 0 : index
    %c0_15 = arith.constant 0 : index
    %41 = vector.load %arg4[%c0_14, %c0_15] : memref<1x32xf32, #tpu.memory_space<vmem>>, vector<1x32xf32>
    %42 = vector.extract_strided_slice %5 {offsets = [0, 0], sizes = [16, 8], strides = [1, 1]} : vector<16x96xf32> to vector<16x8xf32>
    %43 = vector.extract_strided_slice %5 {offsets = [0, 32], sizes = [16, 8], strides = [1, 1]} : vector<16x96xf32> to vector<16x8xf32>
    %44 = vector.extract_strided_slice %5 {offsets = [0, 64], sizes = [16, 8], strides = [1, 1]} : vector<16x96xf32> to vector<16x8xf32>
    %cst_16 = arith.constant dense<0.000000e+00> : vector<16x16xf32>
    %45 = tpu.matmul %42, %43, %cst_16 {dimension_numbers = #tpu.dot_dimension_numbers<[1], [1], [0], [0], [0, 0, 1, 0], [], []>} : vector<16x8xf32>, vector<16x8xf32>, vector<16x16xf32> -> vector<16x16xf32>
    %cst_17 = arith.constant 0.353553385 : f32
    %46 = vector.broadcast %cst_17 : f32 to vector<16x16xf32>
    %47 = arith.mulf %45, %46 : vector<16x16xf32>
    %cst_18 = arith.constant -1.000000e+30 : f32
    %48 = vector.broadcast %cst_18 : f32 to vector<16x16xf32>
    %49 = arith.select %40, %47, %48 : vector<16x16xi1>, vector<16x16xf32>
    %cst_19 = arith.constant dense<0xFF800000> : vector<16xf32>
    %50 = vector.multi_reduction <maximumf>, %49, %cst_19 [1] : vector<16x16xf32> to vector<16xf32>
    %51 = vector.shape_cast %50 : vector<16xf32> to vector<16x1xf32>
    %52 = vector.broadcast %51 : vector<16x1xf32> to vector<16x16xf32>
    %53 = arith.subf %49, %52 : vector<16x16xf32>
    %54 = math.exp %53 : vector<16x16xf32>
    %cst_20 = arith.constant dense<0.000000e+00> : vector<16xf32>
    %55 = vector.multi_reduction <add>, %54, %cst_20 [1] : vector<16x16xf32> to vector<16xf32>
    %56 = vector.shape_cast %55 : vector<16xf32> to vector<16x1xf32>
    %57 = tpu.reciprocal %56 {approx = true} : vector<16x1xf32> -> vector<16x1xf32>
    %58 = vector.broadcast %57 : vector<16x1xf32> to vector<16x16xf32>
    %59 = arith.mulf %54, %58 : vector<16x16xf32>
    %cst_21 = arith.constant dense<0.000000e+00> : vector<16x8xf32>
    %60 = tpu.matmul %59, %44, %cst_21 {dimension_numbers = #tpu.dot_dimension_numbers<[1], [0], [0], [1], [0, 0, 1, 1], [], []>} : vector<16x16xf32>, vector<16x8xf32>, vector<16x8xf32> -> vector<16x8xf32>
    %c0_22 = arith.constant 0 : index
    %c0_23 = arith.constant 0 : index
    %61 = vector.load %arg3[%c0_22, %c0_23] : memref<32x32xf32, #tpu.memory_space<vmem>>, vector<8x32xf32>
    %cst_24 = arith.constant dense<0.000000e+00> : vector<16x32xf32>
    %62 = tpu.matmul %60, %61, %cst_24 {dimension_numbers = #tpu.dot_dimension_numbers<[1], [0], [0], [1], [0, 0, 1, 1], [], []>} : vector<16x8xf32>, vector<8x32xf32>, vector<16x32xf32> -> vector<16x32xf32>
    %63 = vector.broadcast %41 : vector<1x32xf32> to vector<16x32xf32>
    %64 = arith.addf %63, %62 : vector<16x32xf32>
    %65 = vector.extract_strided_slice %5 {offsets = [0, 8], sizes = [16, 8], strides = [1, 1]} : vector<16x96xf32> to vector<16x8xf32>
    %66 = vector.extract_strided_slice %5 {offsets = [0, 40], sizes = [16, 8], strides = [1, 1]} : vector<16x96xf32> to vector<16x8xf32>
    %67 = vector.extract_strided_slice %5 {offsets = [0, 72], sizes = [16, 8], strides = [1, 1]} : vector<16x96xf32> to vector<16x8xf32>
    %cst_25 = arith.constant dense<0.000000e+00> : vector<16x16xf32>
    %68 = tpu.matmul %65, %66, %cst_25 {dimension_numbers = #tpu.dot_dimension_numbers<[1], [1], [0], [0], [0, 0, 1, 0], [], []>} : vector<16x8xf32>, vector<16x8xf32>, vector<16x16xf32> -> vector<16x16xf32>
    %cst_26 = arith.constant 0.353553385 : f32
    %69 = vector.broadcast %cst_26 : f32 to vector<16x16xf32>
    %70 = arith.mulf %68, %69 : vector<16x16xf32>
    %cst_27 = arith.constant -1.000000e+30 : f32
    %71 = vector.broadcast %cst_27 : f32 to vector<16x16xf32>
    %72 = arith.select %40, %70, %71 : vector<16x16xi1>, vector<16x16xf32>
    %cst_28 = arith.constant dense<0xFF800000> : vector<16xf32>
    %73 = vector.multi_reduction <maximumf>, %72, %cst_28 [1] : vector<16x16xf32> to vector<16xf32>
    %74 = vector.shape_cast %73 : vector<16xf32> to vector<16x1xf32>
    %75 = vector.broadcast %74 : vector<16x1xf32> to vector<16x16xf32>
    %76 = arith.subf %72, %75 : vector<16x16xf32>
    %77 = math.exp %76 : vector<16x16xf32>
    %cst_29 = arith.constant dense<0.000000e+00> : vector<16xf32>
    %78 = vector.multi_reduction <add>, %77, %cst_29 [1] : vector<16x16xf32> to vector<16xf32>
    %79 = vector.shape_cast %78 : vector<16xf32> to vector<16x1xf32>
    %80 = tpu.reciprocal %79 {approx = true} : vector<16x1xf32> -> vector<16x1xf32>
    %81 = vector.broadcast %80 : vector<16x1xf32> to vector<16x16xf32>
    %82 = arith.mulf %77, %81 : vector<16x16xf32>
    %cst_30 = arith.constant dense<0.000000e+00> : vector<16x8xf32>
    %83 = tpu.matmul %82, %67, %cst_30 {dimension_numbers = #tpu.dot_dimension_numbers<[1], [0], [0], [1], [0, 0, 1, 1], [], []>} : vector<16x16xf32>, vector<16x8xf32>, vector<16x8xf32> -> vector<16x8xf32>
    %c8 = arith.constant 8 : index
    %c0_31 = arith.constant 0 : index
    %84 = vector.load %arg3[%c8, %c0_31] : memref<32x32xf32, #tpu.memory_space<vmem>>, vector<8x32xf32>
    %cst_32 = arith.constant dense<0.000000e+00> : vector<16x32xf32>
    %85 = tpu.matmul %83, %84, %cst_32 {dimension_numbers = #tpu.dot_dimension_numbers<[1], [0], [0], [1], [0, 0, 1, 1], [], []>} : vector<16x8xf32>, vector<8x32xf32>, vector<16x32xf32> -> vector<16x32xf32>
    %86 = arith.addf %64, %85 : vector<16x32xf32>
    %87 = vector.extract_strided_slice %5 {offsets = [0, 16], sizes = [16, 8], strides = [1, 1]} : vector<16x96xf32> to vector<16x8xf32>
    %88 = vector.extract_strided_slice %5 {offsets = [0, 48], sizes = [16, 8], strides = [1, 1]} : vector<16x96xf32> to vector<16x8xf32>
    %89 = vector.extract_strided_slice %5 {offsets = [0, 80], sizes = [16, 8], strides = [1, 1]} : vector<16x96xf32> to vector<16x8xf32>
    %cst_33 = arith.constant dense<0.000000e+00> : vector<16x16xf32>
    %90 = tpu.matmul %87, %88, %cst_33 {dimension_numbers = #tpu.dot_dimension_numbers<[1], [1], [0], [0], [0, 0, 1, 0], [], []>} : vector<16x8xf32>, vector<16x8xf32>, vector<16x16xf32> -> vector<16x16xf32>
    %cst_34 = arith.constant 0.353553385 : f32
    %91 = vector.broadcast %cst_34 : f32 to vector<16x16xf32>
    %92 = arith.mulf %90, %91 : vector<16x16xf32>
    %cst_35 = arith.constant -1.000000e+30 : f32
    %93 = vector.broadcast %cst_35 : f32 to vector<16x16xf32>
    %94 = arith.select %40, %92, %93 : vector<16x16xi1>, vector<16x16xf32>
    %cst_36 = arith.constant dense<0xFF800000> : vector<16xf32>
    %95 = vector.multi_reduction <maximumf>, %94, %cst_36 [1] : vector<16x16xf32> to vector<16xf32>
    %96 = vector.shape_cast %95 : vector<16xf32> to vector<16x1xf32>
    %97 = vector.broadcast %96 : vector<16x1xf32> to vector<16x16xf32>
    %98 = arith.subf %94, %97 : vector<16x16xf32>
    %99 = math.exp %98 : vector<16x16xf32>
    %cst_37 = arith.constant dense<0.000000e+00> : vector<16xf32>
    %100 = vector.multi_reduction <add>, %99, %cst_37 [1] : vector<16x16xf32> to vector<16xf32>
    %101 = vector.shape_cast %100 : vector<16xf32> to vector<16x1xf32>
    %102 = tpu.reciprocal %101 {approx = true} : vector<16x1xf32> -> vector<16x1xf32>
    %103 = vector.broadcast %102 : vector<16x1xf32> to vector<16x16xf32>
    %104 = arith.mulf %99, %103 : vector<16x16xf32>
    %cst_38 = arith.constant dense<0.000000e+00> : vector<16x8xf32>
    %105 = tpu.matmul %104, %89, %cst_38 {dimension_numbers = #tpu.dot_dimension_numbers<[1], [0], [0], [1], [0, 0, 1, 1], [], []>} : vector<16x16xf32>, vector<16x8xf32>, vector<16x8xf32> -> vector<16x8xf32>
    %c16 = arith.constant 16 : index
    %c0_39 = arith.constant 0 : index
    %106 = vector.load %arg3[%c16, %c0_39] : memref<32x32xf32, #tpu.memory_space<vmem>>, vector<8x32xf32>
    %cst_40 = arith.constant dense<0.000000e+00> : vector<16x32xf32>
    %107 = tpu.matmul %105, %106, %cst_40 {dimension_numbers = #tpu.dot_dimension_numbers<[1], [0], [0], [1], [0, 0, 1, 1], [], []>} : vector<16x8xf32>, vector<8x32xf32>, vector<16x32xf32> -> vector<16x32xf32>
    %108 = arith.addf %86, %107 : vector<16x32xf32>
    %109 = vector.extract_strided_slice %5 {offsets = [0, 24], sizes = [16, 8], strides = [1, 1]} : vector<16x96xf32> to vector<16x8xf32>
    %110 = vector.extract_strided_slice %5 {offsets = [0, 56], sizes = [16, 8], strides = [1, 1]} : vector<16x96xf32> to vector<16x8xf32>
    %111 = vector.extract_strided_slice %5 {offsets = [0, 88], sizes = [16, 8], strides = [1, 1]} : vector<16x96xf32> to vector<16x8xf32>
    %cst_41 = arith.constant dense<0.000000e+00> : vector<16x16xf32>
    %112 = tpu.matmul %109, %110, %cst_41 {dimension_numbers = #tpu.dot_dimension_numbers<[1], [1], [0], [0], [0, 0, 1, 0], [], []>} : vector<16x8xf32>, vector<16x8xf32>, vector<16x16xf32> -> vector<16x16xf32>
    %cst_42 = arith.constant 0.353553385 : f32
    %113 = vector.broadcast %cst_42 : f32 to vector<16x16xf32>
    %114 = arith.mulf %112, %113 : vector<16x16xf32>
    %cst_43 = arith.constant -1.000000e+30 : f32
    %115 = vector.broadcast %cst_43 : f32 to vector<16x16xf32>
    %116 = arith.select %40, %114, %115 : vector<16x16xi1>, vector<16x16xf32>
    %cst_44 = arith.constant dense<0xFF800000> : vector<16xf32>
    %117 = vector.multi_reduction <maximumf>, %116, %cst_44 [1] : vector<16x16xf32> to vector<16xf32>
    %118 = vector.shape_cast %117 : vector<16xf32> to vector<16x1xf32>
    %119 = vector.broadcast %118 : vector<16x1xf32> to vector<16x16xf32>
    %120 = arith.subf %116, %119 : vector<16x16xf32>
    %121 = math.exp %120 : vector<16x16xf32>
    %cst_45 = arith.constant dense<0.000000e+00> : vector<16xf32>
    %122 = vector.multi_reduction <add>, %121, %cst_45 [1] : vector<16x16xf32> to vector<16xf32>
    %123 = vector.shape_cast %122 : vector<16xf32> to vector<16x1xf32>
    %124 = tpu.reciprocal %123 {approx = true} : vector<16x1xf32> -> vector<16x1xf32>
    %125 = vector.broadcast %124 : vector<16x1xf32> to vector<16x16xf32>
    %126 = arith.mulf %121, %125 : vector<16x16xf32>
    %cst_46 = arith.constant dense<0.000000e+00> : vector<16x8xf32>
    %127 = tpu.matmul %126, %111, %cst_46 {dimension_numbers = #tpu.dot_dimension_numbers<[1], [0], [0], [1], [0, 0, 1, 1], [], []>} : vector<16x16xf32>, vector<16x8xf32>, vector<16x8xf32> -> vector<16x8xf32>
    %c24 = arith.constant 24 : index
    %c0_47 = arith.constant 0 : index
    %128 = vector.load %arg3[%c24, %c0_47] : memref<32x32xf32, #tpu.memory_space<vmem>>, vector<8x32xf32>
    %cst_48 = arith.constant dense<0.000000e+00> : vector<16x32xf32>
    %129 = tpu.matmul %127, %128, %cst_48 {dimension_numbers = #tpu.dot_dimension_numbers<[1], [0], [0], [1], [0, 0, 1, 1], [], []>} : vector<16x8xf32>, vector<8x32xf32>, vector<16x32xf32> -> vector<16x32xf32>
    %130 = arith.addf %108, %129 : vector<16x32xf32>
    %131 = arith.addf %0, %130 : vector<16x32xf32>
    %c0_49 = arith.constant 0 : index
    %c0_50 = arith.constant 0 : index
    %132 = vector.load %arg5[%c0_49, %c0_50] : memref<1x32xf32, #tpu.memory_space<vmem>>, vector<1x32xf32>
    %c0_51 = arith.constant 0 : index
    %c0_52 = arith.constant 0 : index
    %133 = vector.load %arg6[%c0_51, %c0_52] : memref<1x32xf32, #tpu.memory_space<vmem>>, vector<1x32xf32>
    %cst_53 = arith.constant dense<0.000000e+00> : vector<16xf32>
    %134 = vector.multi_reduction <add>, %131, %cst_53 [1] : vector<16x32xf32> to vector<16xf32>
    %135 = vector.shape_cast %134 : vector<16xf32> to vector<16x1xf32>
    %cst_54 = arith.constant 3.200000e+01 : f32
    %136 = vector.broadcast %cst_54 : f32 to vector<16x1xf32>
    %137 = arith.divf %135, %136 : vector<16x1xf32>
    %138 = vector.broadcast %137 : vector<16x1xf32> to vector<16x32xf32>
    %139 = arith.subf %131, %138 : vector<16x32xf32>
    %140 = arith.mulf %139, %139 : vector<16x32xf32>
    %cst_55 = arith.constant dense<0.000000e+00> : vector<16xf32>
    %141 = vector.multi_reduction <add>, %140, %cst_55 [1] : vector<16x32xf32> to vector<16xf32>
    %142 = vector.shape_cast %141 : vector<16xf32> to vector<16x1xf32>
    %cst_56 = arith.constant 3.200000e+01 : f32
    %143 = vector.broadcast %cst_56 : f32 to vector<16x1xf32>
    %144 = arith.divf %142, %143 : vector<16x1xf32>
    %cst_57 = arith.constant 9.99999974E-6 : f32
    %145 = vector.broadcast %cst_57 : f32 to vector<16x1xf32>
    %146 = arith.addf %144, %145 : vector<16x1xf32>
    %147 = math.rsqrt %146 : vector<16x1xf32>
    %148 = vector.broadcast %147 : vector<16x1xf32> to vector<16x32xf32>
    %149 = arith.mulf %139, %148 : vector<16x32xf32>
    %150 = vector.broadcast %132 : vector<1x32xf32> to vector<16x32xf32>
    %151 = arith.mulf %149, %150 : vector<16x32xf32>
    %152 = vector.broadcast %133 : vector<1x32xf32> to vector<16x32xf32>
    %153 = arith.addf %151, %152 : vector<16x32xf32>
    %c0_58 = arith.constant 0 : index
    %c0_59 = arith.constant 0 : index
    %154 = vector.load %arg7[%c0_58, %c0_59] : memref<32x64xf32, #tpu.memory_space<vmem>>, vector<32x64xf32>
    %cst_60 = arith.constant dense<0.000000e+00> : vector<16x64xf32>
    %155 = tpu.matmul %153, %154, %cst_60 {dimension_numbers = #tpu.dot_dimension_numbers<[1], [0], [0], [1], [0, 0, 1, 1], [], []>} : vector<16x32xf32>, vector<32x64xf32>, vector<16x64xf32> -> vector<16x64xf32>
    %c0_61 = arith.constant 0 : index
    %c0_62 = arith.constant 0 : index
    %156 = vector.load %arg8[%c0_61, %c0_62] : memref<1x64xf32, #tpu.memory_space<vmem>>, vector<1x64xf32>
    %157 = vector.broadcast %156 : vector<1x64xf32> to vector<16x64xf32>
    %158 = arith.addf %155, %157 : vector<16x64xf32>
    %cst_63 = arith.constant 0.000000e+00 : f32
    %159 = vector.broadcast %cst_63 : f32 to vector<16x64xf32>
    %160 = arith.maximumf %158, %159 : vector<16x64xf32>
    %c0_64 = arith.constant 0 : index
    %c0_65 = arith.constant 0 : index
    %161 = vector.load %arg9[%c0_64, %c0_65] : memref<64x32xf32, #tpu.memory_space<vmem>>, vector<64x32xf32>
    %cst_66 = arith.constant dense<0.000000e+00> : vector<16x32xf32>
    %162 = tpu.matmul %160, %161, %cst_66 {dimension_numbers = #tpu.dot_dimension_numbers<[1], [0], [0], [1], [0, 0, 1, 1], [], []>} : vector<16x64xf32>, vector<64x32xf32>, vector<16x32xf32> -> vector<16x32xf32>
    %c0_67 = arith.constant 0 : index
    %c0_68 = arith.constant 0 : index
    %163 = vector.load %arg10[%c0_67, %c0_68] : memref<1x32xf32, #tpu.memory_space<vmem>>, vector<1x32xf32>
    %164 = vector.broadcast %163 : vector<1x32xf32> to vector<16x32xf32>
    %165 = arith.addf %162, %164 : vector<16x32xf32>
    %166 = arith.addf %153, %165 : vector<16x32xf32>
    %c0_69 = arith.constant 0 : index
    %c0_70 = arith.constant 0 : index
    %167 = vector.load %arg11[%c0_69, %c0_70] : memref<1x32xf32, #tpu.memory_space<vmem>>, vector<1x32xf32>
    %c0_71 = arith.constant 0 : index
    %c0_72 = arith.constant 0 : index
    %168 = vector.load %arg12[%c0_71, %c0_72] : memref<1x32xf32, #tpu.memory_space<vmem>>, vector<1x32xf32>
    %cst_73 = arith.constant dense<0.000000e+00> : vector<16xf32>
    %169 = vector.multi_reduction <add>, %166, %cst_73 [1] : vector<16x32xf32> to vector<16xf32>
    %170 = vector.shape_cast %169 : vector<16xf32> to vector<16x1xf32>
    %cst_74 = arith.constant 3.200000e+01 : f32
    %171 = vector.broadcast %cst_74 : f32 to vector<16x1xf32>
    %172 = arith.divf %170, %171 : vector<16x1xf32>
    %173 = vector.broadcast %172 : vector<16x1xf32> to vector<16x32xf32>
    %174 = arith.subf %166, %173 : vector<16x32xf32>
    %175 = arith.mulf %174, %174 : vector<16x32xf32>
    %cst_75 = arith.constant dense<0.000000e+00> : vector<16xf32>
    %176 = vector.multi_reduction <add>, %175, %cst_75 [1] : vector<16x32xf32> to vector<16xf32>
    %177 = vector.shape_cast %176 : vector<16xf32> to vector<16x1xf32>
    %cst_76 = arith.constant 3.200000e+01 : f32
    %178 = vector.broadcast %cst_76 : f32 to vector<16x1xf32>
    %179 = arith.divf %177, %178 : vector<16x1xf32>
    %cst_77 = arith.constant 9.99999974E-6 : f32
    %180 = vector.broadcast %cst_77 : f32 to vector<16x1xf32>
    %181 = arith.addf %179, %180 : vector<16x1xf32>
    %182 = math.rsqrt %181 : vector<16x1xf32>
    %183 = vector.broadcast %182 : vector<16x1xf32> to vector<16x32xf32>
    %184 = arith.mulf %174, %183 : vector<16x32xf32>
    %185 = vector.broadcast %167 : vector<1x32xf32> to vector<16x32xf32>
    %186 = arith.mulf %184, %185 : vector<16x32xf32>
    %187 = vector.broadcast %168 : vector<1x32xf32> to vector<16x32xf32>
    %188 = arith.addf %186, %187 : vector<16x32xf32>
    %c0_78 = arith.constant 0 : index
    %c0_79 = arith.constant 0 : index
    %189 = vector.load %arg15[%c0_78, %c0_79] : memref<16x32xf32, #tpu.memory_space<vmem>>, vector<16x32xf32>
    tpu.vector_store %arg15[%c0_78, %c0_79], %188 {strides = array<i32>} : memref<16x32xf32, #tpu.memory_space<vmem>>, vector<16x32xf32>,
    return
  }
}

module attributes {stable_mosaic.version = 11 : i64} {
  func.func @_encoder_layer_kernel(%arg0: memref<16x32xf32, #tpu.memory_space<vmem>>, %arg1: memref<32x96xf32, #tpu.memory_space<vmem>>, %arg2: memref<1x96xf32, #tpu.memory_space<vmem>>, %arg3: memref<32x32xf32, #tpu.memory_space<vmem>>, %arg4: memref<1x32xf32, #tpu.memory_space<vmem>>, %arg5: memref<1x32xf32, #tpu.memory_space<vmem>>, %arg6: memref<1x32xf32, #tpu.memory_space<vmem>>, %arg7: memref<32x64xf32, #tpu.memory_space<vmem>>, %arg8: memref<1x64xf32, #tpu.memory_space<vmem>>, %arg9: memref<64x32xf32, #tpu.memory_space<vmem>>, %arg10: memref<1x32xf32, #tpu.memory_space<vmem>>, %arg11: memref<1x32xf32, #tpu.memory_space<vmem>>, %arg12: memref<1x32xf32, #tpu.memory_space<vmem>>, %arg13: memref<1x32xf32, #tpu.memory_space<vmem>>, %arg14: memref<1x32xf32, #tpu.memory_space<vmem>>, %arg15: memref<16x32xf32, #tpu.memory_space<vmem>>) attributes {dimension_semantics = [], scalar_prefetch = 0 : i64, scratch_operands = 0 : i64, tpu.core_type = #tpu.core_type<tc>} {
    %c0 = arith.constant 0 : index
    %c0_0 = arith.constant 0 : index
    %0 = vector.load %arg0[%c0, %c0_0] : memref<16x32xf32, #tpu.memory_space<vmem>>, vector<16x32xf32>
    %c0_1 = arith.constant 0 : index
    %c0_2 = arith.constant 0 : index
    %1 = vector.load %arg1[%c0_1, %c0_2] : memref<32x96xf32, #tpu.memory_space<vmem>>, vector<32x96xf32>
    %cst = arith.constant dense<0.000000e+00> : vector<16x96xf32>
    %2 = tpu.matmul %0, %1, %cst {dimension_numbers = #tpu.dot_dimension_numbers<[1], [0], [0], [1], [0, 0, 1, 1], [], []>} : vector<16x32xf32>, vector<32x96xf32>, vector<16x96xf32> -> vector<16x96xf32>
    %c0_3 = arith.constant 0 : index
    %c0_4 = arith.constant 0 : index
    %3 = vector.load %arg2[%c0_3, %c0_4] : memref<1x96xf32, #tpu.memory_space<vmem>>, vector<1x96xf32>
    %4 = vector.broadcast %3 : vector<1x96xf32> to vector<16x96xf32>
    %5 = arith.addf %2, %4 : vector<16x96xf32>
    %6 = tpu.iota {dimensions = array<i32: 0>} : vector<16x16xi32>
    %7 = tpu.iota {dimensions = array<i32: 1>} : vector<16x16xi32>
    %c2_i32 = arith.constant 2 : i32
    %c0_i32 = arith.constant 0 : i32
    %8 = arith.cmpi eq, %c2_i32, %c0_i32 : i32
    %c1_i32 = arith.constant 1 : i32
    %9 = arith.select %8, %c1_i32, %c2_i32 : i32
    %10 = vector.broadcast %9 : i32 to vector<16x16xi32>
    %11 = arith.remsi %6, %10 : vector<16x16xi32>
    %c0_i32_5 = arith.constant 0 : i32
    %12 = vector.broadcast %c0_i32_5 : i32 to vector<16x16xi32>
    %13 = arith.cmpi ne, %11, %12 : vector<16x16xi32>
    %c0_i32_6 = arith.constant 0 : i32
    %14 = vector.broadcast %c0_i32_6 : i32 to vector<16x16xi32>
    %15 = arith.cmpi slt, %11, %14 : vector<16x16xi32>
    %c0_i32_7 = arith.constant 0 : i32
    %16 = arith.cmpi slt, %9, %c0_i32_7 : i32
    %17 = vector.broadcast %16 : i1 to vector<16x16xi1>
    %18 = vector.broadcast %17 : vector<16x16xi1> to vector<16x16xi1>
    %19 = arith.xori %15, %18 : vector<16x16xi1>
    %20 = arith.andi %19, %13 : vector<16x16xi1>
    %21 = vector.broadcast %9 : i32 to vector<16x16xi32>
    %22 = arith.addi %11, %21 : vector<16x16xi32>
    %23 = arith.select %20, %22, %11 : vector<16x16xi1>, vector<16x16xi32>
    %c2_i32_8 = arith.constant 2 : i32
    %c0_i32_9 = arith.constant 0 : i32
    %24 = arith.cmpi eq, %c2_i32_8, %c0_i32_9 : i32
    %c1_i32_10 = arith.constant 1 : i32
    %25 = arith.select %24, %c1_i32_10, %c2_i32_8 : i32
    %26 = vector.broadcast %25 : i32 to vector<16x16xi32>
    %27 = arith.remsi %7, %26 : vector<16x16xi32>
    %c0_i32_11 = arith.constant 0 : i32
    %28 = vector.broadcast %c0_i32_11 : i32 to vector<16x16xi32>
    %29 = arith.cmpi ne, %27, %28 : vector<16x16xi32>
    %c0_i32_12 = arith.constant 0 : i32
    %30 = vector.broadcast %c0_i32_12 : i32 to vector<16x16xi32>
    %31 = arith.cmpi slt, %27, %30 : vector<16x16xi32>
    %c0_i32_13 = arith.constant 0 : i32
    %32 = arith.cmpi slt, %25, %c0_i32_13 : i32
    %33 = vector.broadcast %32 : i1 to vector<16x16xi1>
    %34 = vector.broadcast %33 : vector<16x16xi1> to vector<16x16xi1>
    %35 = arith.xori %31, %34 : vector<16x16xi1>
    %36 = arith.andi %35, %29 : vector<16x16xi1>
    %37 = vector.broadcast %25 : i32 to vector<16x16xi32>
    %38 = arith.addi %27, %37 : vector<16x16xi32>
    %39 = arith.select %36, %38, %27 : vector<16x16xi1>, vector<16x16xi32>
    %40 = arith.cmpi eq, %23, %39 : vector<16x16xi32>
    %c0_14 = arith.constant 0 : index
    %c0_15 = arith.constant 0 : index
    %41 = vector.load %arg4[%c0_14, %c0_15] : memref<1x32xf32, #tpu.memory_space<vmem>>, vector<1x32xf32>
    %42 = vector.extract_strided_slice %5 {offsets = [0, 0], sizes = [16, 8], strides = [1, 1]} : vector<16x96xf32> to vector<16x8xf32>
    %43 = vector.extract_strided_slice %5 {offsets = [0, 32], sizes = [16, 8], strides = [1, 1]} : vector<16x96xf32> to vector<16x8xf32>
    %44 = vector.extract_strided_slice %5 {offsets = [0, 64], sizes = [16, 8], strides = [1, 1]} : vector<16x96xf32> to vector<16x8xf32>
    %cst_16 = arith.constant dense<0.000000e+00> : vector<16x16xf32>
    %45 = tpu.matmul %42, %43, %cst_16 {dimension_numbers = #tpu.dot_dimension_numbers<[1], [1], [0], [0], [0, 0, 1, 0], [], []>} : vector<16x8xf32>, vector<16x8xf32>, vector<16x16xf32> -> vector<16x16xf32>
    %cst_17 = arith.constant 0.353553385 : f32
    %46 = vector.broadcast %cst_17 : f32 to vector<16x16xf32>
    %47 = arith.mulf %45, %46 : vector<16x16xf32>
    %cst_18 = arith.constant -1.000000e+30 : f32
    %48 = vector.broadcast %cst_18 : f32 to vector<16x16xf32>
    %49 = arith.select %40, %47, %48 : vector<16x16xi1>, vector<16x16xf32>
    %cst_19 = arith.constant dense<0xFF800000> : vector<16xf32>
    %50 = vector.multi_reduction <maximumf>, %49, %cst_19 [1] : vector<16x16xf32> to vector<16xf32>
    %51 = vector.shape_cast %50 : vector<16xf32> to vector<16x1xf32>
    %52 = vector.broadcast %51 : vector<16x1xf32> to vector<16x16xf32>
    %53 = arith.subf %49, %52 : vector<16x16xf32>
    %54 = math.exp %53 : vector<16x16xf32>
    %cst_20 = arith.constant dense<0.000000e+00> : vector<16xf32>
    %55 = vector.multi_reduction <add>, %54, %cst_20 [1] : vector<16x16xf32> to vector<16xf32>
    %56 = vector.shape_cast %55 : vector<16xf32> to vector<16x1xf32>
    %57 = tpu.reciprocal %56 {approx = true} : vector<16x1xf32> -> vector<16x1xf32>
    %58 = vector.broadcast %57 : vector<16x1xf32> to vector<16x16xf32>
    %59 = arith.mulf %54, %58 : vector<16x16xf32>
    %cst_21 = arith.constant dense<0.000000e+00> : vector<16x8xf32>
    %60 = tpu.matmul %59, %44, %cst_21 {dimension_numbers = #tpu.dot_dimension_numbers<[1], [0], [0], [1], [0, 0, 1, 1], [], []>} : vector<16x16xf32>, vector<16x8xf32>, vector<16x8xf32> -> vector<16x8xf32>
    %c0_22 = arith.constant 0 : index
    %c0_23 = arith.constant 0 : index
    %61 = vector.load %arg3[%c0_22, %c0_23] : memref<32x32xf32, #tpu.memory_space<vmem>>, vector<8x32xf32>
    %cst_24 = arith.constant dense<0.000000e+00> : vector<16x32xf32>
    %62 = tpu.matmul %60, %61, %cst_24 {dimension_numbers = #tpu.dot_dimension_numbers<[1], [0], [0], [1], [0, 0, 1, 1], [], []>} : vector<16x8xf32>, vector<8x32xf32>, vector<16x32xf32> -> vector<16x32xf32>
    %63 = vector.broadcast %41 : vector<1x32xf32> to vector<16x32xf32>
    %64 = arith.addf %63, %62 : vector<16x32xf32>
    %65 = vector.extract_strided_slice %5 {offsets = [0, 8], sizes = [16, 8], strides = [1, 1]} : vector<16x96xf32> to vector<16x8xf32>
    %66 = vector.extract_strided_slice %5 {offsets = [0, 40], sizes = [16, 8], strides = [1, 1]} : vector<16x96xf32> to vector<16x8xf32>
    %67 = vector.extract_strided_slice %5 {offsets = [0, 72], sizes = [16, 8], strides = [1, 1]} : vector<16x96xf32> to vector<16x8xf32>
    %cst_25 = arith.constant dense<0.000000e+00> : vector<16x16xf32>
    %68 = tpu.matmul %65, %66, %cst_25 {dimension_numbers = #tpu.dot_dimension_numbers<[1], [1], [0], [0], [0, 0, 1, 0], [], []>} : vector<16x8xf32>, vector<16x8xf32>, vector<16x16xf32> -> vector<16x16xf32>
    %cst_26 = arith.constant 0.353553385 : f32
    %69 = vector.broadcast %cst_26 : f32 to vector<16x16xf32>
    %70 = arith.mulf %68, %69 : vector<16x16xf32>
    %cst_27 = arith.constant -1.000000e+30 : f32
    %71 = vector.broadcast %cst_27 : f32 to vector<16x16xf32>
    %72 = arith.select %40, %70, %71 : vector<16x16xi1>, vector<16x16xf32>
    %cst_28 = arith.constant dense<0xFF800000> : vector<16xf32>
    %73 = vector.multi_reduction <maximumf>, %72, %cst_28 [1] : vector<16x16xf32> to vector<16xf32>
    %74 = vector.shape_cast %73 : vector<16xf32> to vector<16x1xf32>
    %75 = vector.broadcast %74 : vector<16x1xf32> to vector<16x16xf32>
    %76 = arith.subf %72, %75 : vector<16x16xf32>
    %77 = math.exp %76 : vector<16x16xf32>
    %cst_29 = arith.constant dense<0.000000e+00> : vector<16xf32>
    %78 = vector.multi_reduction <add>, %77, %cst_29 [1] : vector<16x16xf32> to vector<16xf32>
    %79 = vector.shape_cast %78 : vector<16xf32> to vector<16x1xf32>
    %80 = tpu.reciprocal %79 {approx = true} : vector<16x1xf32> -> vector<16x1xf32>
    %81 = vector.broadcast %80 : vector<16x1xf32> to vector<16x16xf32>
    %82 = arith.mulf %77, %81 : vector<16x16xf32>
    %cst_30 = arith.constant dense<0.000000e+00> : vector<16x8xf32>
    %83 = tpu.matmul %82, %67, %cst_30 {dimension_numbers = #tpu.dot_dimension_numbers<[1], [0], [0], [1], [0, 0, 1, 1], [], []>} : vector<16x16xf32>, vector<16x8xf32>, vector<16x8xf32> -> vector<16x8xf32>
    %c8 = arith.constant 8 : index
    %c0_31 = arith.constant 0 : index
    %84 = vector.load %arg3[%c8, %c0_31] : memref<32x32xf32, #tpu.memory_space<vmem>>, vector<8x32xf32>
    %cst_32 = arith.constant dense<0.000000e+00> : vector<16x32xf32>
    %85 = tpu.matmul %83, %84, %cst_32 {dimension_numbers = #tpu.dot_dimension_numbers<[1], [0], [0], [1], [0, 0, 1, 1], [], []>} : vector<16x8xf32>, vector<8x32xf32>, vector<16x32xf32> -> vector<16x32xf32>
    %86 = arith.addf %64, %85 : vector<16x32xf32>
    %87 = vector.extract_strided_slice %5 {offsets = [0, 16], sizes = [16, 8], strides = [1, 1]} : vector<16x96xf32> to vector<16x8xf32>
    %88 = vector.extract_strided_slice %5 {offsets = [0, 48], sizes = [16, 8], strides = [1, 1]} : vector<16x96xf32> to vector<16x8xf32>
    %89 = vector.extract_strided_slice %5 {offsets = [0, 80], sizes = [16, 8], strides = [1, 1]} : vector<16x96xf32> to vector<16x8xf32>
    %cst_33 = arith.constant dense<0.000000e+00> : vector<16x16xf32>
    %90 = tpu.matmul %87, %88, %cst_33 {dimension_numbers = #tpu.dot_dimension_numbers<[1], [1], [0], [0], [0, 0, 1, 0], [], []>} : vector<16x8xf32>, vector<16x8xf32>, vector<16x16xf32> -> vector<16x16xf32>
    %cst_34 = arith.constant 0.353553385 : f32
    %91 = vector.broadcast %cst_34 : f32 to vector<16x16xf32>
    %92 = arith.mulf %90, %91 : vector<16x16xf32>
    %cst_35 = arith.constant -1.000000e+30 : f32
    %93 = vector.broadcast %cst_35 : f32 to vector<16x16xf32>
    %94 = arith.select %40, %92, %93 : vector<16x16xi1>, vector<16x16xf32>
    %cst_36 = arith.constant dense<0xFF800000> : vector<16xf32>
    %95 = vector.multi_reduction <maximumf>, %94, %cst_36 [1] : vector<16x16xf32> to vector<16xf32>
    %96 = vector.shape_cast %95 : vector<16xf32> to vector<16x1xf32>
    %97 = vector.broadcast %96 : vector<16x1xf32> to vector<16x16xf32>
    %98 = arith.subf %94, %97 : vector<16x16xf32>
    %99 = math.exp %98 : vector<16x16xf32>
    %cst_37 = arith.constant dense<0.000000e+00> : vector<16xf32>
    %100 = vector.multi_reduction <add>, %99, %cst_37 [1] : vector<16x16xf32> to vector<16xf32>
    %101 = vector.shape_cast %100 : vector<16xf32> to vector<16x1xf32>
    %102 = tpu.reciprocal %101 {approx = true} : vector<16x1xf32> -> vector<16x1xf32>
    %103 = vector.broadcast %102 : vector<16x1xf32> to vector<16x16xf32>
    %104 = arith.mulf %99, %103 : vector<16x16xf32>
    %cst_38 = arith.constant dense<0.000000e+00> : vector<16x8xf32>
    %105 = tpu.matmul %104, %89, %cst_38 {dimension_numbers = #tpu.dot_dimension_numbers<[1], [0], [0], [1], [0, 0, 1, 1], [], []>} : vector<16x16xf32>, vector<16x8xf32>, vector<16x8xf32> -> vector<16x8xf32>
    %c16 = arith.constant 16 : index
    %c0_39 = arith.constant 0 : index
    %106 = vector.load %arg3[%c16, %c0_39] : memref<32x32xf32, #tpu.memory_space<vmem>>, vector<8x32xf32>
    %cst_40 = arith.constant dense<0.000000e+00> : vector<16x32xf32>
    %107 = tpu.matmul %105, %106, %cst_40 {dimension_numbers = #tpu.dot_dimension_numbers<[1], [0], [0], [1], [0, 0, 1, 1], [], []>} : vector<16x8xf32>, vector<8x32xf32>, vector<16x32xf32> -> vector<16x32xf32>
    %108 = arith.addf %86, %107 : vector<16x32xf32>
    %109 = vector.extract_strided_slice %5 {offsets = [0, 24], sizes = [16, 8], strides = [1, 1]} : vector<16x96xf32> to vector<16x8xf32>
    %110 = vector.extract_strided_slice %5 {offsets = [0, 56], sizes = [16, 8], strides = [1, 1]} : vector<16x96xf32> to vector<16x8xf32>
    %111 = vector.extract_strided_slice %5 {offsets = [0, 88], sizes = [16, 8], strides = [1, 1]} : vector<16x96xf32> to vector<16x8xf32>
    %cst_41 = arith.constant dense<0.000000e+00> : vector<16x16xf32>
    %112 = tpu.matmul %109, %110, %cst_41 {dimension_numbers = #tpu.dot_dimension_numbers<[1], [1], [0], [0], [0, 0, 1, 0], [], []>} : vector<16x8xf32>, vector<16x8xf32>, vector<16x16xf32> -> vector<16x16xf32>
    %cst_42 = arith.constant 0.353553385 : f32
    %113 = vector.broadcast %cst_42 : f32 to vector<16x16xf32>
    %114 = arith.mulf %112, %113 : vector<16x16xf32>
    %cst_43 = arith.constant -1.000000e+30 : f32
    %115 = vector.broadcast %cst_43 : f32 to vector<16x16xf32>
    %116 = arith.select %40, %114, %115 : vector<16x16xi1>, vector<16x16xf32>
    %cst_44 = arith.constant dense<0xFF800000> : vector<16xf32>
    %117 = vector.multi_reduction <maximumf>, %116, %cst_44 [1] : vector<16x16xf32> to vector<16xf32>
    %118 = vector.shape_cast %117 : vector<16xf32> to vector<16x1xf32>
    %119 = vector.broadcast %118 : vector<16x1xf32> to vector<16x16xf32>
    %120 = arith.subf %116, %119 : vector<16x16xf32>
    %121 = math.exp %120 : vector<16x16xf32>
    %cst_45 = arith.constant dense<0.000000e+00> : vector<16xf32>
    %122 = vector.multi_reduction <add>, %121, %cst_45 [1] : vector<16x16xf32> to vector<16xf32>
    %123 = vector.shape_cast %122 : vector<16xf32> to vector<16x1xf32>
    %124 = tpu.reciprocal %123 {approx = true} : vector<16x1xf32> -> vector<16x1xf32>
    %125 = vector.broadcast %124 : vector<16x1xf32> to vector<16x16xf32>
    %126 = arith.mulf %121, %125 : vector<16x16xf32>
    %cst_46 = arith.constant dense<0.000000e+00> : vector<16x8xf32>
    %127 = tpu.matmul %126, %111, %cst_46 {dimension_numbers = #tpu.dot_dimension_numbers<[1], [0], [0], [1], [0, 0, 1, 1], [], []>} : vector<16x16xf32>, vector<16x8xf32>, vector<16x8xf32> -> vector<16x8xf32>
    %c24 = arith.constant 24 : index
    %c0_47 = arith.constant 0 : index
    %128 = vector.load %arg3[%c24, %c0_47] : memref<32x32xf32, #tpu.memory_space<vmem>>, vector<8x32xf32>
    %cst_48 = arith.constant dense<0.000000e+00> : vector<16x32xf32>
    %129 = tpu.matmul %127, %128, %cst_48 {dimension_numbers = #tpu.dot_dimension_numbers<[1], [0], [0], [1], [0, 0, 1, 1], [], []>} : vector<16x8xf32>, vector<8x32xf32>, vector<16x32xf32> -> vector<16x32xf32>
    %130 = arith.addf %108, %129 : vector<16x32xf32>
    %131 = arith.addf %0, %130 : vector<16x32xf32>
    %c0_49 = arith.constant 0 : index
    %c0_50 = arith.constant 0 : index
    %132 = vector.load %arg5[%c0_49, %c0_50] : memref<1x32xf32, #tpu.memory_space<vmem>>, vector<1x32xf32>
    %c0_51 = arith.constant 0 : index
    %c0_52 = arith.constant 0 : index
    %133 = vector.load %arg6[%c0_51, %c0_52] : memref<1x32xf32, #tpu.memory_space<vmem>>, vector<1x32xf32>
    %cst_53 = arith.constant dense<0.000000e+00> : vector<16xf32>
    %134 = vector.multi_reduction <add>, %131, %cst_53 [1] : vector<16x32xf32> to vector<16xf32>
    %135 = vector.shape_cast %134 : vector<16xf32> to vector<16x1xf32>
    %cst_54 = arith.constant 3.200000e+01 : f32
    %136 = vector.broadcast %cst_54 : f32 to vector<16x1xf32>
    %137 = arith.divf %135, %136 : vector<16x1xf32>
    %138 = vector.broadcast %137 : vector<16x1xf32> to vector<16x32xf32>
    %139 = arith.subf %131, %138 : vector<16x32xf32>
    %140 = arith.mulf %139, %139 : vector<16x32xf32>
    %cst_55 = arith.constant dense<0.000000e+00> : vector<16xf32>
    %141 = vector.multi_reduction <add>, %140, %cst_55 [1] : vector<16x32xf32> to vector<16xf32>
    %142 = vector.shape_cast %141 : vector<16xf32> to vector<16x1xf32>
    %cst_56 = arith.constant 3.200000e+01 : f32
    %143 = vector.broadcast %cst_56 : f32 to vector<16x1xf32>
    %144 = arith.divf %142, %143 : vector<16x1xf32>
    %cst_57 = arith.constant 9.99999974E-6 : f32
    %145 = vector.broadcast %cst_57 : f32 to vector<16x1xf32>
    %146 = arith.addf %144, %145 : vector<16x1xf32>
    %147 = math.rsqrt %146 : vector<16x1xf32>
    %148 = vector.broadcast %147 : vector<16x1xf32> to vector<16x32xf32>
    %149 = arith.mulf %139, %148 : vector<16x32xf32>
    %150 = vector.broadcast %132 : vector<1x32xf32> to vector<16x32xf32>
    %151 = arith.mulf %149, %150 : vector<16x32xf32>
    %152 = vector.broadcast %133 : vector<1x32xf32> to vector<16x32xf32>
    %153 = arith.addf %151, %152 : vector<16x32xf32>
    %c0_58 = arith.constant 0 : index
    %c0_59 = arith.constant 0 : index
    %154 = vector.load %arg7[%c0_58, %c0_59] : memref<32x64xf32, #tpu.memory_space<vmem>>, vector<32x64xf32>
    %cst_60 = arith.constant dense<0.000000e+00> : vector<16x64xf32>
    %155 = tpu.matmul %153, %154, %cst_60 {dimension_numbers = #tpu.dot_dimension_numbers<[1], [0], [0], [1], [0, 0, 1, 1], [], []>} : vector<16x32xf32>, vector<32x64xf32>, vector<16x64xf32> -> vector<16x64xf32>
    %c0_61 = arith.constant 0 : index
    %c0_62 = arith.constant 0 : index
    %156 = vector.load %arg8[%c0_61, %c0_62] : memref<1x64xf32, #tpu.memory_space<vmem>>, vector<1x64xf32>
    %157 = vector.broadcast %156 : vector<1x64xf32> to vector<16x64xf32>
    %158 = arith.addf %155, %157 : vector<16x64xf32>
    %cst_63 = arith.constant 0.000000e+00 : f32
    %159 = vector.broadcast %cst_63 : f32 to vector<16x64xf32>
    %160 = arith.maximumf %158, %159 : vector<16x64xf32>
    %c0_64 = arith.constant 0 : index
    %c0_65 = arith.constant 0 : index
    %161 = vector.load %arg9[%c0_64, %c0_65] : memref<64x32xf32, #tpu.memory_space<vmem>>, vector<64x32xf32>
    %cst_66 = arith.constant dense<0.000000e+00> : vector<16x32xf32>
    %162 = tpu.matmul %160, %161, %cst_66 {dimension_numbers = #tpu.dot_dimension_numbers<[1], [0], [0], [1], [0, 0, 1, 1], [], []>} : vector<16x64xf32>, vector<64x32xf32>, vector<16x32xf32> -> vector<16x32xf32>
    %c0_67 = arith.constant 0 : index
    %c0_68 = arith.constant 0 : index
    %163 = vector.load %arg10[%c0_67, %c0_68] : memref<1x32xf32, #tpu.memory_space<vmem>>, vector<1x32xf32>
    %164 = vector.broadcast %163 : vector<1x32xf32> to vector<16x32xf32>
    %165 = arith.addf %162, %164 : vector<16x32xf32>
    %166 = arith.addf %153, %165 : vector<16x32xf32>
    %c0_69 = arith.constant 0 : index
    %c0_70 = arith.constant 0 : index
    %167 = vector.load %arg11[%c0_69, %c0_70] : memref<1x32xf32, #tpu.memory_space<vmem>>, vector<1x32xf32>
    %c0_71 = arith.constant 0 : index
    %c0_72 = arith.constant 0 : index
    %168 = vector.load %arg12[%c0_71, %c0_72] : memref<1x32xf32, #tpu.memory_space<vmem>>, vector<1x32xf32>
    %cst_73 = arith.constant dense<0.000000e+00> : vector<16xf32>
    %169 = vector.multi_reduction <add>, %166, %cst_73 [1] : vector<16x32xf32> to vector<16xf32>
    %170 = vector.shape_cast %169 : vector<16xf32> to vector<16x1xf32>
    %cst_74 = arith.constant 3.200000e+01 : f32
    %171 = vector.broadcast %cst_74 : f32 to vector<16x1xf32>
    %172 = arith.divf %170, %171 : vector<16x1xf32>
    %173 = vector.broadcast %172 : vector<16x1xf32> to vector<16x32xf32>
    %174 = arith.subf %166, %173 : vector<16x32xf32>
    %175 = arith.mulf %174, %174 : vector<16x32xf32>
    %cst_75 = arith.constant dense<0.000000e+00> : vector<16xf32>
    %176 = vector.multi_reduction <add>, %175, %cst_75 [1] : vector<16x32xf32> to vector<16xf32>
    %177 = vector.shape_cast %176 : vector<16xf32> to vector<16x1xf32>
    %cst_76 = arith.constant 3.200000e+01 : f32
    %178 = vector.broadcast %cst_76 : f32 to vector<16x1xf32>
    %179 = arith.divf %177, %178 : vector<16x1xf32>
    %cst_77 = arith.constant 9.99999974E-6 : f32
    %180 = vector.broadcast %cst_77 : f32 to vector<16x1xf32>
    %181 = arith.addf %179, %180 : vector<16x1xf32>
    %182 = math.rsqrt %181 : vector<16x1xf32>
    %183 = vector.broadcast %182 : vector<16x1xf32> to vector<16x32xf32>
    %184 = arith.mulf %174, %183 : vector<16x32xf32>
    %185 = vector.broadcast %167 : vector<1x32xf32> to vector<16x32xf32>
    %186 = arith.mulf %184, %185 : vector<16x32xf32>
    %187 = vector.broadcast %168 : vector<1x32xf32> to vector<16x32xf32>
    %188 = arith.addf %186, %187 : vector<16x32xf32>
    %c0_78 = arith.constant 0 : index
    %c0_79 = arith.constant 0 : index
    %189 = vector.load %arg13[%c0_78, %c0_79] : memref<1x32xf32, #tpu.memory_space<vmem>>, vector<1x32xf32>
    %c0_80 = arith.constant 0 : index
    %c0_81 = arith.constant 0 : index
    %190 = vector.load %arg14[%c0_80, %c0_81] : memref<1x32xf32, #tpu.memory_space<vmem>>, vector<1x32xf32>
    %cst_82 = arith.constant dense<0.000000e+00> : vector<16xf32>
    %191 = vector.multi_reduction <add>, %188, %cst_82 [1] : vector<16x32xf32> to vector<16xf32>
    %192 = vector.shape_cast %191 : vector<16xf32> to vector<16x1xf32>
    %cst_83 = arith.constant 3.200000e+01 : f32
    %193 = vector.broadcast %cst_83 : f32 to vector<16x1xf32>
    %194 = arith.divf %192, %193 : vector<16x1xf32>
    %195 = vector.broadcast %194 : vector<16x1xf32> to vector<16x32xf32>
    %196 = arith.subf %188, %195 : vector<16x32xf32>
    %197 = arith.mulf %196, %196 : vector<16x32xf32>
    %cst_84 = arith.constant dense<0.000000e+00> : vector<16xf32>
    %198 = vector.multi_reduction <add>, %197, %cst_84 [1] : vector<16x32xf32> to vector<16xf32>
    %199 = vector.shape_cast %198 : vector<16xf32> to vector<16x1xf32>
    %cst_85 = arith.constant 3.200000e+01 : f32
    %200 = vector.broadcast %cst_85 : f32 to vector<16x1xf32>
    %201 = arith.divf %199, %200 : vector<16x1xf32>
    %cst_86 = arith.constant 9.99999974E-6 : f32
    %202 = vector.broadcast %cst_86 : f32 to vector<16x1xf32>
    %203 = arith.addf %201, %202 : vector<16x1xf32>
    %204 = math.rsqrt %203 : vector<16x1xf32>
    %205 = vector.broadcast %204 : vector<16x1xf32> to vector<16x32xf32>
    %206 = arith.mulf %196, %205 : vector<16x32xf32>
    %207 = vector.broadcast %189 : vector<1x32xf32> to vector<16x32xf32>
    %208 = arith.mulf %206, %207 : vector<16x32xf32>
    %209 = vector.broadcast %190 : vector<1x32xf32> to vector<16x32xf32>
    %210 = arith.addf %208, %209 : vector<16x32xf32>
    %c0_87 = arith.constant 0 : index
    %c0_88 = arith.constant 0 : index
    %211 = vector.load %arg15[%c0_87, %c0_88] : memref<16x32xf32, #tpu.memory_space<vmem>>, vector<16x32xf32>
    tpu.vector_store %arg15[%c0_87, %c0_88], %210 {strides = array<i32>} : memref<16x32xf32, #tpu.memory_space<vmem>>, vector<16x32xf32>,
    return
  }
}

</mosaic_0001>

<llo_original>
// kernel: pulse_encoder_forward.3
$region0: #{pulse_encoder_forward.3}
  #allocation0 [shape = 'u32[]', space=smem, size = 0x4, offset = 0x4, fixed_abs, tag = 'smem constant byte address 0x4 - core index']
  #allocation1 [shape = 'u32[72,128]{1,0:T(1,128)}', space=vmem, size = 0x9000, scoped, tag = 'internal scratch']
  %s0 = inlined_call_operand.vmem [shape: f32[16,1], index: 0, kind: input, shape index: {}]
  %s1 = inlined_call_operand.vmem [shape: f32[1,32], index: 1, kind: input, shape index: {}]
  %s2 = inlined_call_operand.vmem [shape: f32[1,32], index: 2, kind: input, shape index: {}]
  %s3 = inlined_call_operand.vmem [shape: f32[16,32], index: 3, kind: input, shape index: {}]
  %s4 = inlined_call_operand.vmem [shape: f32[16,32], index: 4, kind: output, shape index: {}]
  %s5 = sld [smem:[#allocation0]]
  $region26: #{pulse_encoder_forward.3} parent=0
    _
  %s7 = ssub.s32 1, %s5
  %s8 = scalar_select 0, %s7, %s5
  // Predicated region
  $region2: #{pulse_encoder_forward.3} parent=0 // pred_check
    _
  $region3: #{pulse_encoder_forward.3} parent=0 // pred_check_branch
    %10 = sbr.rel (0) target = $region5
  $region4: #{pulse_encoder_forward.3} parent=0 // pred_region
    _
  $region5: #{pulse_encoder_forward.3} parent=0 // pred_fallthru
    _
  // Predicated region
  $region6: #{pulse_encoder_forward.3} parent=0 // pred_check
    _
  $region7: #{pulse_encoder_forward.3} parent=0 // pred_check_branch
    %12 = sbr.rel (0) target = $region9
  $region8: #{pulse_encoder_forward.3} parent=0 // pred_region
    _
  $region9: #{pulse_encoder_forward.3} parent=0 // pred_fallthru
    _
  // Predicated region
  $region10: #{pulse_encoder_forward.3} parent=0 // pred_check
    _
  $region11: #{pulse_encoder_forward.3} parent=0 // pred_check_branch
    %14 = sbr.rel (0) target = $region13
  $region12: #{pulse_encoder_forward.3} parent=0 // pred_region
    _
  $region13: #{pulse_encoder_forward.3} parent=0 // pred_fallthru
    _
  // Predicated region
  $region14: #{pulse_encoder_forward.3} parent=0 // pred_check
    _
  $region15: #{pulse_encoder_forward.3} parent=0 // pred_check_branch
    %16 = sbr.rel (0) target = $region17
  $region16: #{pulse_encoder_forward.3} parent=0 // pred_region
    _
  $region17: #{pulse_encoder_forward.3} parent=0 // pred_fallthru
    _
  %v17 = vld [vmem:[%s0] sm:$0xff]
  %v18 = vld [vmem:[%s0 + $0x8] sm:$0xff]
  %v19 = vld [vmem:[%s1] sm:$0x1]
  %21 = vset.pattern.permute.xlu0 0
  %22 = vperm.xlu0 %21, %v17
  %v23 = vpop.permute.xlu0 %22
  %26 = vset.pattern.permute.xlu0 0
  %27 = vperm.xlu0 %26, %v18
  %v28 = vpop.permute.xlu0 %27
  %v31 = vperm.slane %v19, 0
  %v33 = vmul.f32 %v23, %v31
  %v34 = vmul.f32 %v28, %v31
  %v35 = vld [vmem:[%s2] sm:$0x1]
  %v37 = vperm.slane %v35, 0
  %v39 = vadd.f32 %v33, %v37
  %v40 = vadd.f32 %v34, %v37
  %v41 = vmul.f32 %v39, 5.656854
  %v42 = vmul.f32 %v40, 5.656854
  %v43 = vld [vmem:[%s3] sm:$0xff]
  %v44 = vld [vmem:[%s3 + $0x8] sm:$0xff]
  %v45 = vadd.f32 %v41, %v43
  %v46 = vadd.f32 %v42, %v44
  %vm47 = vcmask 261120
  %48 = vst.msk [vmem:[%s4] sm:$0xff] %vm47, %v45
  %49 = vst.msk [vmem:[%s4 + $0x8] sm:$0xff] %vm47, %v46
  // Predicated region
  $region18: #{pulse_encoder_forward.3} parent=0 // pred_check
    _
  $region19: #{pulse_encoder_forward.3} parent=0 // pred_check_branch
    %51 = sbr.rel (0) target = $region21
  $region20: #{pulse_encoder_forward.3} parent=0 // pred_region
    _
  $region21: #{pulse_encoder_forward.3} parent=0 // pred_fallthru
    _
  // Predicated region
  $region22: #{pulse_encoder_forward.3} parent=0 // pred_check
    _
  $region23: #{pulse_encoder_forward.3} parent=0 // pred_check_branch
    %53 = sbr.rel (0) target = $region25
  $region24: #{pulse_encoder_forward.3} parent=0 // pred_region
    _
  $region25: #{pulse_encoder_forward.3} parent=0 // pred_fallthru
    _

// kernel: pulse_encoder_forward.5
$region0: #{pulse_encoder_forward.5}
  #allocation0 [shape = 'u32[]', space=smem, size = 0x4, offset = 0x4, fixed_abs, tag = 'smem constant byte address 0x4 - core index']
  #allocation1 [shape = 'u32[72,128]{1,0:T(1,128)}', space=vmem, size = 0x9000, scoped, tag = 'internal scratch']
  %s0 = inlined_call_operand.vmem [shape: f32[16,32], index: 0, kind: input, shape index: {}]
  %s1 = inlined_call_operand.hbm [shape: f32[32,96], index: 1, kind: input, shape index: {}]
  %s2 = inlined_call_operand.vmem [shape: f32[1,96], index: 2, kind: input, shape index: {}]
  %s3 = inlined_call_operand.hbm [shape: f32[32,32], index: 3, kind: input, shape index: {}]
  %s4 = inlined_call_operand.vmem [shape: f32[1,32], index: 4, kind: input, shape index: {}]
  %s5 = inlined_call_operand.vmem [shape: f32[1,32], index: 5, kind: input, shape index: {}, may-alias: {5,11,13}]
  %s6 = inlined_call_operand.vmem [shape: f32[1,32], index: 6, kind: input, shape index: {}, may-alias: {6,12,14}]
  %s7 = inlined_call_operand.hbm [shape: f32[32,64], index: 7, kind: input, shape index: {}]
  %s8 = inlined_call_operand.vmem [shape: f32[1,64], index: 8, kind: input, shape index: {}]
  %s9 = inlined_call_operand.hbm [shape: f32[64,32], index: 9, kind: input, shape index: {}]
  %s10 = inlined_call_operand.vmem [shape: f32[1,32], index: 10, kind: input, shape index: {}]
  %s11 = inlined_call_operand.vmem [shape: f32[1,32], index: 11, kind: input, shape index: {}, may-alias: {5,11,13}]
  %s12 = inlined_call_operand.vmem [shape: f32[1,32], index: 12, kind: input, shape index: {}, may-alias: {6,12,14}]
  %s13 = inlined_call_operand.vmem [shape: f32[1,32], index: 13, kind: input, shape index: {}, may-alias: {5,11,13}]
  %s14 = inlined_call_operand.vmem [shape: f32[1,32], index: 14, kind: input, shape index: {}, may-alias: {6,12,14}]
  %s15 = inlined_call_operand.hbm [shape: f32[16,32], index: 15, kind: output, shape index: {}]
  %s16 = sld [smem:[#allocation0]]
  $region86: #{pulse_encoder_forward.5} parent=0
    _
  %s18 = ssub.s32 1, %s16
  %s19 = scalar_select 0, %s18, %s16
  $region1: #{pulse_encoder_forward.5} parent=0
    #allocation2 [shape = 'u8[16384]{0}', space=vmem, size = 0x4000, scoped, tag = 'input window, operand 1, single buffered']
    #allocation3 [shape = 's32[1]{0}', space=sflag, size = 0x4, scoped, tag = 'scoped memory for pulse_encoder_forward.5']
    #allocation4 [shape = 's32[1]{0}', space=sflag, size = 0x4, scoped, tag = 'scoped memory for pulse_encoder_forward.5']
    #allocation5 [shape = 'u8[16384]{0}', space=vmem, size = 0x4000, scoped, tag = 'input window, operand 3, single buffered']
    #allocation6 [shape = 's32[1]{0}', space=sflag, size = 0x4, scoped, tag = 'scoped memory for pulse_encoder_forward.5']
    #allocation7 [shape = 'u8[16384]{0}', space=vmem, size = 0x4000, scoped, tag = 'input window, operand 7, single buffered']
    #allocation8 [shape = 'u8[32768]{0}', space=vmem, size = 0x8000, scoped, tag = 'input window, operand 9, single buffered']
    #allocation9 [shape = 's32[1]{0}', space=sflag, size = 0x4, scoped, tag = 'scoped memory for pulse_encoder_forward.5']
    #allocation10 [shape = 'u8[8192]{0}', space=vmem, size = 0x2000, scoped, tag = 'output window, operand 0, single buffered']
    %20 = vsyncpa [#allocation3], 0
    %21 = vsyncpa [#allocation6], 0
    %22 = vsyncpa [#allocation9], 0
    %23 = vsyncpa [#allocation4], 0
    // Predicated region
    $region2: #{pulse_encoder_forward.5} parent=1 // pred_check
      _
    $region3: #{pulse_encoder_forward.5} parent=1 // pred_check_branch
      %25 = sbr.rel (0) target = $region5
    $region4: #{pulse_encoder_forward.5} parent=1 // pred_region
      _
    $region5: #{pulse_encoder_forward.5} parent=1 // pred_fallthru
      _
    // Predicated region
    $region6: #{pulse_encoder_forward.5} parent=1 // pred_check
      _
    $region7: #{pulse_encoder_forward.5} parent=1 // pred_check_branch
      %27 = sbr.rel (0) target = $region9
    $region8: #{pulse_encoder_forward.5} parent=1 // pred_region
      %29 = vsyncadd [#allocation3], 0
      %s30 = sshll.u32 %s1, 4
      %s31 = int_to_ptr.hbm [resolvable:$true] %s30
      %s32 = sshll.u32 [#allocation2], 4
      %s33 = int_to_ptr.vmem [resolvable:$true] %s32
      %38 = dma.hbm_to_vmem [thread:$0]  %s31, 512, %s33, [#allocation3], 128, 128, 8
    $region9: #{pulse_encoder_forward.5} parent=1 // pred_fallthru
      _
    // Predicated region
    $region10: #{pulse_encoder_forward.5} parent=1 // pred_check
      _
    $region11: #{pulse_encoder_forward.5} parent=1 // pred_check_branch
      %40 = sbr.rel (0) target = $region13
    $region12: #{pulse_encoder_forward.5} parent=1 // pred_region
      _
    $region13: #{pulse_encoder_forward.5} parent=1 // pred_fallthru
      _
    // Predicated region
    $region14: #{pulse_encoder_forward.5} parent=1 // pred_check
      _
    $region15: #{pulse_encoder_forward.5} parent=1 // pred_check_branch
      %42 = sbr.rel (0) target = $region17
    $region16: #{pulse_encoder_forward.5} parent=1 // pred_region
      %44 = vsyncadd [#allocation6], 0
      %s45 = sshll.u32 %s3, 4
      %s46 = int_to_ptr.hbm [resolvable:$true] %s45
      %s47 = sshll.u32 [#allocation5], 4
      %s48 = int_to_ptr.vmem [resolvable:$true] %s47
      %53 = dma.hbm_to_vmem [thread:$0]  %s46, 512, %s48, [#allocation6], 128, 128, 8
    $region17: #{pulse_encoder_forward.5} parent=1 // pred_fallthru
      _
    // Predicated region
    $region18: #{pulse_encoder_forward.5} parent=1 // pred_check
      _
    $region19: #{pulse_encoder_forward.5} parent=1 // pred_check_branch
      %55 = sbr.rel (0) target = $region21
    $region20: #{pulse_encoder_forward.5} parent=1 // pred_region
      _
    $region21: #{pulse_encoder_forward.5} parent=1 // pred_fallthru
      _
    // Predicated region
    $region22: #{pulse_encoder_forward.5} parent=1 // pred_check
      _
    $region23: #{pulse_encoder_forward.5} parent=1 // pred_check_branch
      %57 = sbr.rel (0) target = $region25
    $region24: #{pulse_encoder_forward.5} parent=1 // pred_region
      _
    $region25: #{pulse_encoder_forward.5} parent=1 // pred_fallthru
      _
    // Predicated region
    $region26: #{pulse_encoder_forward.5} parent=1 // pred_check
      _
    $region27: #{pulse_encoder_forward.5} parent=1 // pred_check_branch
      %59 = sbr.rel (0) target = $region29
    $region28: #{pulse_encoder_forward.5} parent=1 // pred_region
      _
    $region29: #{pulse_encoder_forward.5} parent=1 // pred_fallthru
      _
    // Predicated region
    $region30: #{pulse_encoder_forward.5} parent=1 // pred_check
      _
    $region31: #{pulse_encoder_forward.5} parent=1 // pred_check_branch
      %61 = sbr.rel (0) target = $region33
    $region32: #{pulse_encoder_forward.5} parent=1 // pred_region
      %63 = vsyncadd [#allocation6], 0
      %s64 = sshll.u32 %s7, 4
      %s65 = int_to_ptr.hbm [resolvable:$true] %s64
      %s66 = sshll.u32 [#allocation7], 4
      %s67 = int_to_ptr.vmem [resolvable:$true] %s66
      %72 = dma.hbm_to_vmem [thread:$0]  %s65, 512, %s67, [#allocation6], 128, 128, 8
    $region33: #{pulse_encoder_forward.5} parent=1 // pred_fallthru
      _
    // Predicated region
    $region34: #{pulse_encoder_forward.5} parent=1 // pred_check
      _
    $region35: #{pulse_encoder_forward.5} parent=1 // pred_check_branch
      %74 = sbr.rel (0) target = $region37
    $region36: #{pulse_encoder_forward.5} parent=1 // pred_region
      _
    $region37: #{pulse_encoder_forward.5} parent=1 // pred_fallthru
      _
    // Predicated region
    $region38: #{pulse_encoder_forward.5} parent=1 // pred_check
      _
    $region39: #{pulse_encoder_forward.5} parent=1 // pred_check_branch
      %76 = sbr.rel (0) target = $region41
    $region40: #{pulse_encoder_forward.5} parent=1 // pred_region
      %78 = vsyncadd [#allocation9], 0
      %s79 = sshll.u32 %s9, 4
      %s80 = int_to_ptr.hbm [resolvable:$true] %s79
      %s81 = sshll.u32 [#allocation8], 4
      %s82 = int_to_ptr.vmem [resolvable:$true] %s81
      %87 = dma.hbm_to_vmem [thread:$0]  %s80, 1024, %s82, [#allocation9], 128, 128, 8
    $region41: #{pulse_encoder_forward.5} parent=1 // pred_fallthru
      _
    // Predicated region
    $region42: #{pulse_encoder_forward.5} parent=1 // pred_check
      _
    $region43: #{pulse_encoder_forward.5} parent=1 // pred_check_branch
      %89 = sbr.rel (0) target = $region45
    $region44: #{pulse_encoder_forward.5} parent=1 // pred_region
      _
    $region45: #{pulse_encoder_forward.5} parent=1 // pred_fallthru
      _
    // Predicated region
    $region46: #{pulse_encoder_forward.5} parent=1 // pred_check
      _
    $region47: #{pulse_encoder_forward.5} parent=1 // pred_check_branch
      %91 = sbr.rel (0) target = $region49
    $region48: #{pulse_encoder_forward.5} parent=1 // pred_region
      _
    $region49: #{pulse_encoder_forward.5} parent=1 // pred_fallthru
      _
    // Predicated region
    $region50: #{pulse_encoder_forward.5} parent=1 // pred_check
      _
    $region51: #{pulse_encoder_forward.5} parent=1 // pred_check_branch
      %93 = sbr.rel (0) target = $region53
    $region52: #{pulse_encoder_forward.5} parent=1 // pred_region
      _
    $region53: #{pulse_encoder_forward.5} parent=1 // pred_fallthru
      _
    // Predicated region
    $region54: #{pulse_encoder_forward.5} parent=1 // pred_check
      _
    $region55: #{pulse_encoder_forward.5} parent=1 // pred_check_branch
      %95 = sbr.rel (0) target = $region57
    $region56: #{pulse_encoder_forward.5} parent=1 // pred_region
      _
    $region57: #{pulse_encoder_forward.5} parent=1 // pred_fallthru
      _
    // Predicated region
    $region58: #{pulse_encoder_forward.5} parent=1 // pred_check
      _
    $region59: #{pulse_encoder_forward.5} parent=1 // pred_check_branch
      %97 = sbr.rel (0) target = $region61
    $region60: #{pulse_encoder_forward.5} parent=1 // pred_region
      _
    $region61: #{pulse_encoder_forward.5} parent=1 // pred_fallthru
      _
    // Predicated region
    $region62: #{pulse_encoder_forward.5} parent=1 // pred_check
      _
    $region63: #{pulse_encoder_forward.5} parent=1 // pred_check_branch
      %99 = sbr.rel (0) target = $region65
    $region64: #{pulse_encoder_forward.5} parent=1 // pred_region
      %101 = dma.done [#allocation3], 512
    $region65: #{pulse_encoder_forward.5} parent=1 // pred_fallthru
      _
    // Predicated region
    $region66: #{pulse_encoder_forward.5} parent=1 // pred_check
      _
    $region67: #{pulse_encoder_forward.5} parent=1 // pred_check_branch
      %103 = sbr.rel (0) target = $region69
    $region68: #{pulse_encoder_forward.5} parent=1 // pred_region
      %105 = dma.done [#allocation6], 512
    $region69: #{pulse_encoder_forward.5} parent=1 // pred_fallthru
      _
    // Predicated region
    $region70: #{pulse_encoder_forward.5} parent=1 // pred_check
      _
    $region71: #{pulse_encoder_forward.5} parent=1 // pred_check_branch
      %107 = sbr.rel (0) target = $region73
    $region72: #{pulse_encoder_forward.5} parent=1 // pred_region
      %109 = dma.done [#allocation6], 512
    $region73: #{pulse_encoder_forward.5} parent=1 // pred_fallthru
      _
    // Predicated region
    $region74: #{pulse_encoder_forward.5} parent=1 // pred_check
      _
    $region75: #{pulse_encoder_forward.5} parent=1 // pred_check_branch
      %111 = sbr.rel (0) target = $region77
    $region76: #{pulse_encoder_forward.5} parent=1 // pred_region
      %113 = dma.done [#allocation9], 1024
    $region77: #{pulse_encoder_forward.5} parent=1 // pred_fallthru
      _
    %v114 = vld [vmem:[%s0] sm:$0xff]
    %v115 = vld [vmem:[%s0 + $0x8] sm:$0xff]
    %v116 = vld [vmem:[#allocation2] sm:$0xff]
    %v117 = vld [vmem:[#allocation2 + $0x8] sm:$0xff]
    %v118 = vld [vmem:[#allocation2 + $0x10] sm:$0xff]
    %v119 = vld [vmem:[#allocation2 + $0x18] sm:$0xff]
    %v120 = vld [vmem:[%s2] sm:$0x1]
    %v122 = vperm.slane %v120, 0
    %vm124 = vcmask 261120
    %v126 = vsel %vm124, %v114, 0
    %v129 = vsel %vm124, %v115, 0
    %131 = vmatpush.msra.mxu0 0.0
    %132 = vmatpush.msra.mxu0 0.0
    %133 = vmatpush.msra.mxu0 0.0
    %134 = vmatpush.msra.mxu0 0.0
    %135 = vmatpush.msra.mxu0 0.0
    %136 = vmatpush.msra.mxu0 0.0
    %137 = vmatpush.msra.mxu0 0.0
    %138 = vmatpush.msra.mxu0 0.0
    %139 = vmatpush.msra.mxu0 0.0
    %140 = vmatpush.msra.mxu0 0.0
    %141 = vmatpush.msra.mxu0 0.0
    %142 = vmatpush.msra.mxu0 0.0
    %143 = vmatpush.msra.mxu0 %v119
    %144 = vmatpush.msra.mxu0 %v118
    %145 = vmatpush.msra.mxu0 %v117
    %146 = vmatpush.msra.mxu0 %v116
    %147 = vmatmul.f32.gmra.mxu0 %v126
    %v148 = vpop.f32.mrf.mxu0
    %v149 = vadd.f32 %v122, %v148
    %150 = vmatmul.f32.gmra.mxu0 %v129
    %v151 = vpop.f32.mrf.mxu0
    %v152 = vadd.f32 %v122, %v151
    %153 = vdwg.mxu0
    %v154 = vlaneseq
    %v155 = vshrl.u32 %v154, 7
    %v156 = vadd.s32 %v155, 8
    %v157 = vlaneseq
    %v158 = vand.u32 %v157, 127
    %vm159 = vcmp.lt.s32.totalorder %v155, 0
    %v160 = vsub.s32 0, %v155
    %v161 = vsel %vm159, %v160, %v155
    %v162 = vshrl.u32 %v161, 1
    %v163 = vand.u32 %v161, 1
    %v164 = vsub.s32 0, %v163
    %v165 = vsel %vm159, %v164, %v163
    %vm166 = vcmp.lt.s32.totalorder %v156, 0
    %v167 = vsub.s32 0, %v156
    %v168 = vsel %vm166, %v167, %v156
    %v169 = vshrl.u32 %v168, 1
    %v170 = vand.u32 %v168, 1
    %v171 = vsub.s32 0, %v170
    %v172 = vsel %vm166, %v171, %v170
    %vm173 = vcmp.ne.s32.totalorder %v165, 0
    %vm174 = vcmp.ne.s32.totalorder %v172, 0
    %vm175 = vcmp.lt.s32.totalorder %v165, 0
    %vm176 = vcmp.lt.s32.totalorder %v172, 0
    %vm177 = vmand %vm175, %vm173
    %vm178 = vmand %vm176, %vm174
    %v179 = vadd.s32 %v165, 2
    %v180 = vadd.s32 %v172, 2
    %v181 = vsel %vm177, %v179, %v165
    %v182 = vsel %vm178, %v180, %v172
    %vm183 = vcmp.lt.s32.totalorder %v158, 0
    %v184 = vsub.s32 0, %v158
    %v185 = vsel %vm183, %v184, %v158
    %v186 = vshrl.u32 %v185, 1
    %v187 = vand.u32 %v185, 1
    %v188 = vsub.s32 0, %v187
    %v189 = vsel %vm183, %v188, %v187
    %vm190 = vcmp.ne.s32.totalorder %v189, 0
    %vm191 = vcmp.lt.s32.totalorder %v189, 0
    %vm192 = vmand %vm191, %vm190
    %v193 = vadd.s32 %v189, 2
    %v194 = vsel %vm192, %v193, %v189
    %vm195 = vcmp.eq.s32.totalorder %v181, %v194
    %vm196 = vcmp.eq.s32.totalorder %v182, %v194
    %v197 = vld [vmem:[%s4] sm:$0x1]
    %200 = vrot.lane.b32.xlu0 %v149, 96
    %v201 = vpop.permute.xlu0 %200
    %202 = vrot.lane.b32.xlu0 %v152, 96
    %v203 = vpop.permute.xlu0 %202
    %vm204 = vcmask 64512
    %v205 = vsel %vm204, %v149, 0
    %v207 = vsel %vm204, %v152, 0
    %v209 = vsel %vm204, %v201, 0
    %v211 = vsel %vm204, %v203, 0
    %213 = vmatpush.xpose.msra.mxu0 0.0
    %214 = vmatpush.xpose.msra.mxu0 0.0
    %215 = vmatpush.xpose.msra.mxu0 0.0
    %216 = vmatpush.xpose.msra.mxu0 0.0
    %217 = vmatpush.xpose.msra.mxu0 0.0
    %218 = vmatpush.xpose.msra.mxu0 0.0
    %219 = vmatpush.xpose.msra.mxu0 0.0
    %220 = vmatpush.xpose.msra.mxu0 0.0
    %221 = vmatpush.xpose.msra.mxu0 0.0
    %222 = vmatpush.xpose.msra.mxu0 0.0
    %223 = vmatpush.xpose.msra.mxu0 0.0
    %224 = vmatpush.xpose.msra.mxu0 0.0
    %225 = vmatpush.xpose.msra.mxu0 0.0
    %226 = vmatpush.xpose.msra.mxu0 0.0
    %227 = vmatpush.xpose.msra.mxu0 %v211
    %228 = vmatpush.xpose.msra.mxu0 %v209
    %229 = vmatmul.f32.gmra.mxu0 %v205
    %v230 = vpop.f32.mrf.mxu0
    %v231 = vadd.f32 0.0, %v230
    %232 = vmatmul.f32.gmra.mxu0 %v207
    %v233 = vpop.f32.mrf.mxu0
    %v234 = vadd.f32 0.0, %v233
    %235 = vdwg.mxu0
    %v236 = vmul.f32 %v231, 0.35355338
    %v237 = vmul.f32 %v234, 0.35355338
    %v238 = vsel %vm195, %v236, -1e+30
    %v239 = vsel %vm196, %v237, -1e+30
    %vm240 = vcmask 130048
    %v241 = vsel %vm240, %v238, -inf
    %242 = vmax.xlane.f32.xlu0 %v241
    %v243 = vpop.xlane.xlu0 %242
    %v244 = vsel %vm240, %v239, -inf
    %245 = vmax.xlane.f32.xlu0 %v244
    %v246 = vpop.xlane.xlu0 %245
    %v247 = vsub.f32 %v238, %v243
    %v248 = vsub.f32 %v239, %v246
    %v249 = vmul.f32 %v247, 1.442695
    %v250 = vpow.pop %v249
    %v251 = vmul.f32 %v248, 1.442695
    %v252 = vpow.pop %v251
    %v253 = vsel %vm240, %v250, 0.0
    %254 = vadd.xlane.f32.xlu0 %v253
    %v255 = vpop.xlane.xlu0 %254
    %v256 = vsel %vm240, %v252, 0.0
    %257 = vadd.xlane.f32.xlu0 %v256
    %v258 = vpop.xlane.xlu0 %257
    %v259 = vrcp.pop %v255
    %v260 = vrcp.pop %v258
    %v261 = vmul.f32 %v250, %v259
    %v262 = vmul.f32 %v252, %v260
    %263 = vrot.lane.b32.xlu0 %v149, 64
    %v264 = vpop.permute.xlu0 %263
    %265 = vrot.lane.b32.xlu0 %v152, 64
    %v266 = vpop.permute.xlu0 %265
    %v270 = vsel %vm240, %v261, 0
    %v273 = vsel %vm240, %v262, 0
    %275 = vmatpush.msra.mxu0 0.0
    %276 = vmatpush.msra.mxu0 0.0
    %277 = vmatpush.msra.mxu0 0.0
    %278 = vmatpush.msra.mxu0 0.0
    %279 = vmatpush.msra.mxu0 0.0
    %280 = vmatpush.msra.mxu0 0.0
    %281 = vmatpush.msra.mxu0 0.0
    %282 = vmatpush.msra.mxu0 0.0
    %283 = vmatpush.msra.mxu0 0.0
    %284 = vmatpush.msra.mxu0 0.0
    %285 = vmatpush.msra.mxu0 0.0
    %286 = vmatpush.msra.mxu0 0.0
    %287 = vmatpush.msra.mxu0 0.0
    %288 = vmatpush.msra.mxu0 0.0
    %289 = vmatpush.msra.mxu0 %v266
    %290 = vmatpush.msra.mxu0 %v264
    %291 = vmatmul.f32.gmra.mxu0 %v270
    %v292 = vpop.f32.mrf.mxu0
    %v293 = vadd.f32 0.0, %v292
    %294 = vmatmul.f32.gmra.mxu0 %v273
    %v295 = vpop.f32.mrf.mxu0
    %v296 = vadd.f32 0.0, %v295
    %297 = vdwg.mxu0
    %v298 = vld [vmem:[#allocation5] sm:$0xff]
    %v300 = vsel %vm204, %v293, 0
    %v303 = vsel %vm204, %v296, 0
    %305 = vmatpush.msra.mxu0 0.0
    %306 = vmatpush.msra.mxu0 0.0
    %307 = vmatpush.msra.mxu0 0.0
    %308 = vmatpush.msra.mxu0 0.0
    %309 = vmatpush.msra.mxu0 0.0
    %310 = vmatpush.msra.mxu0 0.0
    %311 = vmatpush.msra.mxu0 0.0
    %312 = vmatpush.msra.mxu0 0.0
    %313 = vmatpush.msra.mxu0 0.0
    %314 = vmatpush.msra.mxu0 0.0
    %315 = vmatpush.msra.mxu0 0.0
    %316 = vmatpush.msra.mxu0 0.0
    %317 = vmatpush.msra.mxu0 0.0
    %318 = vmatpush.msra.mxu0 0.0
    %319 = vmatpush.msra.mxu0 0.0
    %320 = vmatpush.msra.mxu0 %v298
    %321 = vmatmul.f32.gmra.mxu0 %v300
    %v322 = vpop.f32.mrf.mxu0
    %v323 = vadd.f32 0.0, %v322
    %324 = vmatmul.f32.gmra.mxu0 %v303
    %v325 = vpop.f32.mrf.mxu0
    %v326 = vadd.f32 0.0, %v325
    %327 = vdwg.mxu0
    %v329 = vperm.slane %v197, 0
    %v331 = vadd.f32 %v329, %v323
    %v332 = vadd.f32 %v329, %v326
    %333 = vrot.lane.b32.xlu0 %v149, 120
    %v334 = vpop.permute.xlu0 %333
    %335 = vrot.lane.b32.xlu0 %v152, 120
    %v336 = vpop.permute.xlu0 %335
    %337 = vrot.lane.b32.xlu0 %v149, 88
    %v338 = vpop.permute.xlu0 %337
    %339 = vrot.lane.b32.xlu0 %v152, 88
    %v340 = vpop.permute.xlu0 %339
    %v341 = vsel %vm204, %v334, 0
    %v343 = vsel %vm204, %v336, 0
    %v345 = vsel %vm204, %v338, 0
    %v347 = vsel %vm204, %v340, 0
    %349 = vmatpush.xpose.msra.mxu0 0.0
    %350 = vmatpush.xpose.msra.mxu0 0.0
    %351 = vmatpush.xpose.msra.mxu0 0.0
    %352 = vmatpush.xpose.msra.mxu0 0.0
    %353 = vmatpush.xpose.msra.mxu0 0.0
    %354 = vmatpush.xpose.msra.mxu0 0.0
    %355 = vmatpush.xpose.msra.mxu0 0.0
    %356 = vmatpush.xpose.msra.mxu0 0.0
    %357 = vmatpush.xpose.msra.mxu0 0.0
    %358 = vmatpush.xpose.msra.mxu0 0.0
    %359 = vmatpush.xpose.msra.mxu0 0.0
    %360 = vmatpush.xpose.msra.mxu0 0.0
    %361 = vmatpush.xpose.msra.mxu0 0.0
    %362 = vmatpush.xpose.msra.mxu0 0.0
    %363 = vmatpush.xpose.msra.mxu0 %v347
    %364 = vmatpush.xpose.msra.mxu0 %v345
    %365 = vmatmul.f32.gmra.mxu0 %v341
    %v366 = vpop.f32.mrf.mxu0
    %v367 = vadd.f32 0.0, %v366
    %368 = vmatmul.f32.gmra.mxu0 %v343
    %v369 = vpop.f32.mrf.mxu0
    %v370 = vadd.f32 0.0, %v369
    %371 = vdwg.mxu0
    %v372 = vmul.f32 %v367, 0.35355338
    %v373 = vmul.f32 %v370, 0.35355338
    %v374 = vsel %vm195, %v372, -1e+30
    %v375 = vsel %vm196, %v373, -1e+30
    %v376 = vsel %vm240, %v374, -inf
    %377 = vmax.xlane.f32.xlu0 %v376
    %v378 = vpop.xlane.xlu0 %377
    %v379 = vsel %vm240, %v375, -inf
    %380 = vmax.xlane.f32.xlu0 %v379
    %v381 = vpop.xlane.xlu0 %380
    %v382 = vsub.f32 %v374, %v378
    %v383 = vsub.f32 %v375, %v381
    %v384 = vmul.f32 %v382, 1.442695
    %v385 = vpow.pop %v384
    %v386 = vmul.f32 %v383, 1.442695
    %v387 = vpow.pop %v386
    %v388 = vsel %vm240, %v385, 0.0
    %389 = vadd.xlane.f32.xlu0 %v388
    %v390 = vpop.xlane.xlu0 %389
    %v391 = vsel %vm240, %v387, 0.0
    %392 = vadd.xlane.f32.xlu0 %v391
    %v393 = vpop.xlane.xlu0 %392
    %v394 = vrcp.pop %v390
    %v395 = vrcp.pop %v393
    %v396 = vmul.f32 %v385, %v394
    %v397 = vmul.f32 %v387, %v395
    %398 = vrot.lane.b32.xlu0 %v149, 56
    %v399 = vpop.permute.xlu0 %398
    %400 = vrot.lane.b32.xlu0 %v152, 56
    %v401 = vpop.permute.xlu0 %400
    %v405 = vsel %vm240, %v396, 0
    %v408 = vsel %vm240, %v397, 0
    %410 = vmatpush.msra.mxu0 0.0
    %411 = vmatpush.msra.mxu0 0.0
    %412 = vmatpush.msra.mxu0 0.0
    %413 = vmatpush.msra.mxu0 0.0
    %414 = vmatpush.msra.mxu0 0.0
    %415 = vmatpush.msra.mxu0 0.0
    %416 = vmatpush.msra.mxu0 0.0
    %417 = vmatpush.msra.mxu0 0.0
    %418 = vmatpush.msra.mxu0 0.0
    %419 = vmatpush.msra.mxu0 0.0
    %420 = vmatpush.msra.mxu0 0.0
    %421 = vmatpush.msra.mxu0 0.0
    %422 = vmatpush.msra.mxu0 0.0
    %423 = vmatpush.msra.mxu0 0.0
    %424 = vmatpush.msra.mxu0 %v401
    %425 = vmatpush.msra.mxu0 %v399
    %426 = vmatmul.f32.gmra.mxu0 %v405
    %v427 = vpop.f32.mrf.mxu0
    %v428 = vadd.f32 0.0, %v427
    %429 = vmatmul.f32.gmra.mxu0 %v408
    %v430 = vpop.f32.mrf.mxu0
    %v431 = vadd.f32 0.0, %v430
    %432 = vdwg.mxu0
    %v433 = vld [vmem:[#allocation5 + $0x8] sm:$0xff]
    %v435 = vsel %vm204, %v428, 0
    %v438 = vsel %vm204, %v431, 0
    %440 = vmatpush.msra.mxu0 0.0
    %441 = vmatpush.msra.mxu0 0.0
    %442 = vmatpush.msra.mxu0 0.0
    %443 = vmatpush.msra.mxu0 0.0
    %444 = vmatpush.msra.mxu0 0.0
    %445 = vmatpush.msra.mxu0 0.0
    %446 = vmatpush.msra.mxu0 0.0
    %447 = vmatpush.msra.mxu0 0.0
    %448 = vmatpush.msra.mxu0 0.0
    %449 = vmatpush.msra.mxu0 0.0
    %450 = vmatpush.msra.mxu0 0.0
    %451 = vmatpush.msra.mxu0 0.0
    %452 = vmatpush.msra.mxu0 0.0
    %453 = vmatpush.msra.mxu0 0.0
    %454 = vmatpush.msra.mxu0 0.0
    %455 = vmatpush.msra.mxu0 %v433
    %456 = vmatmul.f32.gmra.mxu0 %v435
    %v457 = vpop.f32.mrf.mxu0
    %v458 = vadd.f32 0.0, %v457
    %459 = vmatmul.f32.gmra.mxu0 %v438
    %v460 = vpop.f32.mrf.mxu0
    %v461 = vadd.f32 0.0, %v460
    %462 = vdwg.mxu0
    %v463 = vadd.f32 %v331, %v458
    %v464 = vadd.f32 %v332, %v461
    %465 = vrot.lane.b32.xlu0 %v149, 112
    %v466 = vpop.permute.xlu0 %465
    %467 = vrot.lane.b32.xlu0 %v152, 112
    %v468 = vpop.permute.xlu0 %467
    %469 = vrot.lane.b32.xlu0 %v149, 80
    %v470 = vpop.permute.xlu0 %469
    %471 = vrot.lane.b32.xlu0 %v152, 80
    %v472 = vpop.permute.xlu0 %471
    %v473 = vsel %vm204, %v466, 0
    %v475 = vsel %vm204, %v468, 0
    %v477 = vsel %vm204, %v470, 0
    %v479 = vsel %vm204, %v472, 0
    %481 = vmatpush.xpose.msra.mxu0 0.0
    %482 = vmatpush.xpose.msra.mxu0 0.0
    %483 = vmatpush.xpose.msra.mxu0 0.0
    %484 = vmatpush.xpose.msra.mxu0 0.0
    %485 = vmatpush.xpose.msra.mxu0 0.0
    %486 = vmatpush.xpose.msra.mxu0 0.0
    %487 = vmatpush.xpose.msra.mxu0 0.0
    %488 = vmatpush.xpose.msra.mxu0 0.0
    %489 = vmatpush.xpose.msra.mxu0 0.0
    %490 = vmatpush.xpose.msra.mxu0 0.0
    %491 = vmatpush.xpose.msra.mxu0 0.0
    %492 = vmatpush.xpose.msra.mxu0 0.0
    %493 = vmatpush.xpose.msra.mxu0 0.0
    %494 = vmatpush.xpose.msra.mxu0 0.0
    %495 = vmatpush.xpose.msra.mxu0 %v479
    %496 = vmatpush.xpose.msra.mxu0 %v477
    %497 = vmatmul.f32.gmra.mxu0 %v473
    %v498 = vpop.f32.mrf.mxu0
    %v499 = vadd.f32 0.0, %v498
    %500 = vmatmul.f32.gmra.mxu0 %v475
    %v501 = vpop.f32.mrf.mxu0
    %v502 = vadd.f32 0.0, %v501
    %503 = vdwg.mxu0
    %v504 = vmul.f32 %v499, 0.35355338
    %v505 = vmul.f32 %v502, 0.35355338
    %v506 = vsel %vm195, %v504, -1e+30
    %v507 = vsel %vm196, %v505, -1e+30
    %v508 = vsel %vm240, %v506, -inf
    %509 = vmax.xlane.f32.xlu0 %v508
    %v510 = vpop.xlane.xlu0 %509
    %v511 = vsel %vm240, %v507, -inf
    %512 = vmax.xlane.f32.xlu0 %v511
    %v513 = vpop.xlane.xlu0 %512
    %v514 = vsub.f32 %v506, %v510
    %v515 = vsub.f32 %v507, %v513
    %v516 = vmul.f32 %v514, 1.442695
    %v517 = vpow.pop %v516
    %v518 = vmul.f32 %v515, 1.442695
    %v519 = vpow.pop %v518
    %v520 = vsel %vm240, %v517, 0.0
    %521 = vadd.xlane.f32.xlu0 %v520
    %v522 = vpop.xlane.xlu0 %521
    %v523 = vsel %vm240, %v519, 0.0
    %524 = vadd.xlane.f32.xlu0 %v523
    %v525 = vpop.xlane.xlu0 %524
    %v526 = vrcp.pop %v522
    %v527 = vrcp.pop %v525
    %v528 = vmul.f32 %v517, %v526
    %v529 = vmul.f32 %v519, %v527
    %530 = vrot.lane.b32.xlu0 %v149, 48
    %v531 = vpop.permute.xlu0 %530
    %532 = vrot.lane.b32.xlu0 %v152, 48
    %v533 = vpop.permute.xlu0 %532
    %v537 = vsel %vm240, %v528, 0
    %v540 = vsel %vm240, %v529, 0
    %542 = vmatpush.msra.mxu0 0.0
    %543 = vmatpush.msra.mxu0 0.0
    %544 = vmatpush.msra.mxu0 0.0
    %545 = vmatpush.msra.mxu0 0.0
    %546 = vmatpush.msra.mxu0 0.0
    %547 = vmatpush.msra.mxu0 0.0
    %548 = vmatpush.msra.mxu0 0.0
    %549 = vmatpush.msra.mxu0 0.0
    %550 = vmatpush.msra.mxu0 0.0
    %551 = vmatpush.msra.mxu0 0.0
    %552 = vmatpush.msra.mxu0 0.0
    %553 = vmatpush.msra.mxu0 0.0
    %554 = vmatpush.msra.mxu0 0.0
    %555 = vmatpush.msra.mxu0 0.0
    %556 = vmatpush.msra.mxu0 %v533
    %557 = vmatpush.msra.mxu0 %v531
    %558 = vmatmul.f32.gmra.mxu0 %v537
    %v559 = vpop.f32.mrf.mxu0
    %v560 = vadd.f32 0.0, %v559
    %561 = vmatmul.f32.gmra.mxu0 %v540
    %v562 = vpop.f32.mrf.mxu0
    %v563 = vadd.f32 0.0, %v562
    %564 = vdwg.mxu0
    %v565 = vld [vmem:[#allocation5 + $0x10] sm:$0xff]
    %v567 = vsel %vm204, %v560, 0
    %v570 = vsel %vm204, %v563, 0
    %572 = vmatpush.msra.mxu0 0.0
    %573 = vmatpush.msra.mxu0 0.0
    %574 = vmatpush.msra.mxu0 0.0
    %575 = vmatpush.msra.mxu0 0.0
    %576 = vmatpush.msra.mxu0 0.0
    %577 = vmatpush.msra.mxu0 0.0
    %578 = vmatpush.msra.mxu0 0.0
    %579 = vmatpush.msra.mxu0 0.0
    %580 = vmatpush.msra.mxu0 0.0
    %581 = vmatpush.msra.mxu0 0.0
    %582 = vmatpush.msra.mxu0 0.0
    %583 = vmatpush.msra.mxu0 0.0
    %584 = vmatpush.msra.mxu0 0.0
    %585 = vmatpush.msra.mxu0 0.0
    %586 = vmatpush.msra.mxu0 0.0
    %587 = vmatpush.msra.mxu0 %v565
    %588 = vmatmul.f32.gmra.mxu0 %v567
    %v589 = vpop.f32.mrf.mxu0
    %v590 = vadd.f32 0.0, %v589
    %591 = vmatmul.f32.gmra.mxu0 %v570
    %v592 = vpop.f32.mrf.mxu0
    %v593 = vadd.f32 0.0, %v592
    %594 = vdwg.mxu0
    %v595 = vadd.f32 %v463, %v590
    %v596 = vadd.f32 %v464, %v593
    %597 = vrot.lane.b32.xlu0 %v149, 104
    %v598 = vpop.permute.xlu0 %597
    %599 = vrot.lane.b32.xlu0 %v152, 104
    %v600 = vpop.permute.xlu0 %599
    %601 = vrot.lane.b32.xlu0 %v149, 72
    %v602 = vpop.permute.xlu0 %601
    %603 = vrot.lane.b32.xlu0 %v152, 72
    %v604 = vpop.permute.xlu0 %603
    %v605 = vsel %vm204, %v598, 0
    %v607 = vsel %vm204, %v600, 0
    %v609 = vsel %vm204, %v602, 0
    %v611 = vsel %vm204, %v604, 0
    %613 = vmatpush.xpose.msra.mxu0 0.0
    %614 = vmatpush.xpose.msra.mxu0 0.0
    %615 = vmatpush.xpose.msra.mxu0 0.0
    %616 = vmatpush.xpose.msra.mxu0 0.0
    %617 = vmatpush.xpose.msra.mxu0 0.0
    %618 = vmatpush.xpose.msra.mxu0 0.0
    %619 = vmatpush.xpose.msra.mxu0 0.0
    %620 = vmatpush.xpose.msra.mxu0 0.0
    %621 = vmatpush.xpose.msra.mxu0 0.0
    %622 = vmatpush.xpose.msra.mxu0 0.0
    %623 = vmatpush.xpose.msra.mxu0 0.0
    %624 = vmatpush.xpose.msra.mxu0 0.0
    %625 = vmatpush.xpose.msra.mxu0 0.0
    %626 = vmatpush.xpose.msra.mxu0 0.0
    %627 = vmatpush.xpose.msra.mxu0 %v611
    %628 = vmatpush.xpose.msra.mxu0 %v609
    %629 = vmatmul.f32.gmra.mxu0 %v605
    %v630 = vpop.f32.mrf.mxu0
    %v631 = vadd.f32 0.0, %v630
    %632 = vmatmul.f32.gmra.mxu0 %v607
    %v633 = vpop.f32.mrf.mxu0
    %v634 = vadd.f32 0.0, %v633
    %635 = vdwg.mxu0
    %v636 = vmul.f32 %v631, 0.35355338
    %v637 = vmul.f32 %v634, 0.35355338
    %v638 = vsel %vm195, %v636, -1e+30
    %v639 = vsel %vm196, %v637, -1e+30
    %v640 = vsel %vm240, %v638, -inf
    %641 = vmax.xlane.f32.xlu0 %v640
    %v642 = vpop.xlane.xlu0 %641
    %v643 = vsel %vm240, %v639, -inf
    %644 = vmax.xlane.f32.xlu0 %v643
    %v645 = vpop.xlane.xlu0 %644
    %v646 = vsub.f32 %v638, %v642
    %v647 = vsub.f32 %v639, %v645
    %v648 = vmul.f32 %v646, 1.442695
    %v649 = vpow.pop %v648
    %v650 = vmul.f32 %v647, 1.442695
    %v651 = vpow.pop %v650
    %v652 = vsel %vm240, %v649, 0.0
    %653 = vadd.xlane.f32.xlu0 %v652
    %v654 = vpop.xlane.xlu0 %653
    %v655 = vsel %vm240, %v651, 0.0
    %656 = vadd.xlane.f32.xlu0 %v655
    %v657 = vpop.xlane.xlu0 %656
    %v658 = vrcp.pop %v654
    %v659 = vrcp.pop %v657
    %v660 = vmul.f32 %v649, %v658
    %v661 = vmul.f32 %v651, %v659
    %662 = vrot.lane.b32.xlu0 %v149, 40
    %v663 = vpop.permute.xlu0 %662
    %664 = vrot.lane.b32.xlu0 %v152, 40
    %v665 = vpop.permute.xlu0 %664
    %v669 = vsel %vm240, %v660, 0
    %v672 = vsel %vm240, %v661, 0
    %674 = vmatpush.msra.mxu0 0.0
    %675 = vmatpush.msra.mxu0 0.0
    %676 = vmatpush.msra.mxu0 0.0
    %677 = vmatpush.msra.mxu0 0.0
    %678 = vmatpush.msra.mxu0 0.0
    %679 = vmatpush.msra.mxu0 0.0
    %680 = vmatpush.msra.mxu0 0.0
    %681 = vmatpush.msra.mxu0 0.0
    %682 = vmatpush.msra.mxu0 0.0
    %683 = vmatpush.msra.mxu0 0.0
    %684 = vmatpush.msra.mxu0 0.0
    %685 = vmatpush.msra.mxu0 0.0
    %686 = vmatpush.msra.mxu0 0.0
    %687 = vmatpush.msra.mxu0 0.0
    %688 = vmatpush.msra.mxu0 %v665
    %689 = vmatpush.msra.mxu0 %v663
    %690 = vmatmul.f32.gmra.mxu0 %v669
    %v691 = vpop.f32.mrf.mxu0
    %v692 = vadd.f32 0.0, %v691
    %693 = vmatmul.f32.gmra.mxu0 %v672
    %v694 = vpop.f32.mrf.mxu0
    %v695 = vadd.f32 0.0, %v694
    %696 = vdwg.mxu0
    %v697 = vld [vmem:[#allocation5 + $0x18] sm:$0xff]
    %v699 = vsel %vm204, %v692, 0
    %v702 = vsel %vm204, %v695, 0
    %704 = vmatpush.msra.mxu0 0.0
    %705 = vmatpush.msra.mxu0 0.0
    %706 = vmatpush.msra.mxu0 0.0
    %707 = vmatpush.msra.mxu0 0.0
    %708 = vmatpush.msra.mxu0 0.0
    %709 = vmatpush.msra.mxu0 0.0
    %710 = vmatpush.msra.mxu0 0.0
    %711 = vmatpush.msra.mxu0 0.0
    %712 = vmatpush.msra.mxu0 0.0
    %713 = vmatpush.msra.mxu0 0.0
    %714 = vmatpush.msra.mxu0 0.0
    %715 = vmatpush.msra.mxu0 0.0
    %716 = vmatpush.msra.mxu0 0.0
    %717 = vmatpush.msra.mxu0 0.0
    %718 = vmatpush.msra.mxu0 0.0
    %719 = vmatpush.msra.mxu0 %v697
    %720 = vmatmul.f32.gmra.mxu0 %v699
    %v721 = vpop.f32.mrf.mxu0
    %v722 = vadd.f32 0.0, %v721
    %723 = vmatmul.f32.gmra.mxu0 %v702
    %v724 = vpop.f32.mrf.mxu0
    %v725 = vadd.f32 0.0, %v724
    %726 = vdwg.mxu0
    %v727 = vadd.f32 %v595, %v722
    %v728 = vadd.f32 %v596, %v725
    %v729 = vadd.f32 %v114, %v727
    %v730 = vadd.f32 %v115, %v728
    %v731 = vld [vmem:[%s5] sm:$0x1]
    %v732 = vld [vmem:[%s6] sm:$0x1]
    %v733 = vsel %vm124, %v729, 0.0
    %734 = vadd.xlane.f32.xlu0 %v733
    %v735 = vpop.xlane.xlu0 %734
    %v736 = vsel %vm124, %v730, 0.0
    %737 = vadd.xlane.f32.xlu0 %v736
    %v738 = vpop.xlane.xlu0 %737
    %v739 = vrcp.pop 32.0
    %v740 = vmul.f32 32.0, %v739
    %v741 = vsub.f32 1.0, %v740
    %v742 = vmul.f32 %v739, %v741
    %v743 = vadd.f32 %v739, %v742
    %vm744 = vweird.f32 %v739
    %v745 = vsel %vm744, %v739, %v743
    %v746 = vmul.f32 %v735, %v745
    %v747 = vmul.f32 %v738, %v745
    %v748 = vsub.f32 %v729, %v746
    %v749 = vsub.f32 %v730, %v747
    %v750 = vmul.f32 %v748, %v748
    %v751 = vmul.f32 %v749, %v749
    %v752 = vsel %vm124, %v750, 0.0
    %753 = vadd.xlane.f32.xlu0 %v752
    %v754 = vpop.xlane.xlu0 %753
    %v755 = vsel %vm124, %v751, 0.0
    %756 = vadd.xlane.f32.xlu0 %v755
    %v757 = vpop.xlane.xlu0 %756
    %v758 = vmul.f32 %v754, %v745
    %v759 = vmul.f32 %v757, %v745
    %v760 = vadd.f32 %v758, 1e-05
    %v761 = vadd.f32 %v759, 1e-05
    %v762 = vrsqrt.pop %v760
    %v763 = vmul.f32 %v762, %v760
    %v764 = vmul.f32 %v763, %v762
    %v765 = vmul.f32 0.5, %v764
    %v766 = vsub.f32 1.5, %v765
    %v767 = vmul.f32 %v762, %v766
    %vm768 = vweird.f32 %v760
    %vm769 = vweird.f32 %v762
    %vm770 = vmor %vm768, %vm769
    %v771 = vsel %vm770, %v762, %v767
    %v772 = vrsqrt.pop %v761
    %v773 = vmul.f32 %v772, %v761
    %v774 = vmul.f32 %v773, %v772
    %v775 = vmul.f32 0.5, %v774
    %v776 = vsub.f32 1.5, %v775
    %v777 = vmul.f32 %v772, %v776
    %vm778 = vweird.f32 %v761
    %vm779 = vweird.f32 %v772
    %vm780 = vmor %vm778, %vm779
    %v781 = vsel %vm780, %v772, %v777
    %v782 = vmul.f32 %v748, %v771
    %v783 = vmul.f32 %v749, %v781
    %v785 = vperm.slane %v731, 0
    %v787 = vmul.f32 %v782, %v785
    %v788 = vmul.f32 %v783, %v785
    %v790 = vperm.slane %v732, 0
    %v792 = vadd.f32 %v787, %v790
    %v793 = vadd.f32 %v788, %v790
    %v794 = vld [vmem:[#allocation7] sm:$0xff]
    %v795 = vld [vmem:[#allocation7 + $0x8] sm:$0xff]
    %v796 = vld [vmem:[#allocation7 + $0x10] sm:$0xff]
    %v797 = vld [vmem:[#allocation7 + $0x18] sm:$0xff]
    %v798 = vld [vmem:[%s8] sm:$0x1]
    %v800 = vperm.slane %v798, 0
    %v803 = vsel %vm124, %v792, 0
    %v806 = vsel %vm124, %v793, 0
    %808 = vmatpush.msra.mxu0 0.0
    %809 = vmatpush.msra.mxu0 0.0
    %810 = vmatpush.msra.mxu0 0.0
    %811 = vmatpush.msra.mxu0 0.0
    %812 = vmatpush.msra.mxu0 0.0
    %813 = vmatpush.msra.mxu0 0.0
    %814 = vmatpush.msra.mxu0 0.0
    %815 = vmatpush.msra.mxu0 0.0
    %816 = vmatpush.msra.mxu0 0.0
    %817 = vmatpush.msra.mxu0 0.0
    %818 = vmatpush.msra.mxu0 0.0
    %819 = vmatpush.msra.mxu0 0.0
    %820 = vmatpush.msra.mxu0 %v797
    %821 = vmatpush.msra.mxu0 %v796
    %822 = vmatpush.msra.mxu0 %v795
    %823 = vmatpush.msra.mxu0 %v794
    %824 = vmatmul.f32.gmra.mxu0 %v803
    %v825 = vpop.f32.mrf.mxu0
    %v826 = vadd.f32 %v800, %v825
    %827 = vmatmul.f32.gmra.mxu0 %v806
    %v828 = vpop.f32.mrf.mxu0
    %v829 = vadd.f32 %v800, %v828
    %830 = vdwg.mxu0
    %v831 = vmax.f32 %v826, 0.0
    %v832 = vmax.f32 %v829, 0.0
    %v833 = vld [vmem:[#allocation8] sm:$0xff]
    %v834 = vld [vmem:[#allocation8 + $0x8] sm:$0xff]
    %v835 = vld [vmem:[#allocation8 + $0x10] sm:$0xff]
    %v836 = vld [vmem:[#allocation8 + $0x18] sm:$0xff]
    %v837 = vld [vmem:[#allocation8 + $0x20] sm:$0xff]
    %v838 = vld [vmem:[#allocation8 + $0x28] sm:$0xff]
    %v839 = vld [vmem:[#allocation8 + $0x30] sm:$0xff]
    %v840 = vld [vmem:[#allocation8 + $0x38] sm:$0xff]
    %v841 = vld [vmem:[%s10] sm:$0x1]
    %v843 = vperm.slane %v841, 0
    %vm845 = vcmask 523264
    %v847 = vsel %vm845, %v831, 0
    %v850 = vsel %vm845, %v832, 0
    %852 = vmatpush.msra.mxu0 0.0
    %853 = vmatpush.msra.mxu0 0.0
    %854 = vmatpush.msra.mxu0 0.0
    %855 = vmatpush.msra.mxu0 0.0
    %856 = vmatpush.msra.mxu0 0.0
    %857 = vmatpush.msra.mxu0 0.0
    %858 = vmatpush.msra.mxu0 0.0
    %859 = vmatpush.msra.mxu0 0.0
    %860 = vmatpush.msra.mxu0 %v840
    %861 = vmatpush.msra.mxu0 %v839
    %862 = vmatpush.msra.mxu0 %v838
    %863 = vmatpush.msra.mxu0 %v837
    %864 = vmatpush.msra.mxu0 %v836
    %865 = vmatpush.msra.mxu0 %v835
    %866 = vmatpush.msra.mxu0 %v834
    %867 = vmatpush.msra.mxu0 %v833
    %868 = vmatmul.f32.gmra.mxu0 %v847
    %v869 = vpop.f32.mrf.mxu0
    %v870 = vadd.f32 %v843, %v869
    %871 = vmatmul.f32.gmra.mxu0 %v850
    %v872 = vpop.f32.mrf.mxu0
    %v873 = vadd.f32 %v843, %v872
    %874 = vdwg.mxu0
    %v875 = vadd.f32 %v792, %v870
    %v876 = vadd.f32 %v793, %v873
    %v877 = vld [vmem:[%s11] sm:$0x1]
    %v878 = vld [vmem:[%s12] sm:$0x1]
    %v879 = vsel %vm124, %v875, 0.0
    %880 = vadd.xlane.f32.xlu0 %v879
    %v881 = vpop.xlane.xlu0 %880
    %v882 = vsel %vm124, %v876, 0.0
    %883 = vadd.xlane.f32.xlu0 %v882
    %v884 = vpop.xlane.xlu0 %883
    %v885 = vmul.f32 %v881, %v745
    %v886 = vmul.f32 %v884, %v745
    %v887 = vsub.f32 %v875, %v885
    %v888 = vsub.f32 %v876, %v886
    %v889 = vmul.f32 %v887, %v887
    %v890 = vmul.f32 %v888, %v888
    %v891 = vsel %vm124, %v889, 0.0
    %892 = vadd.xlane.f32.xlu0 %v891
    %v893 = vpop.xlane.xlu0 %892
    %v894 = vsel %vm124, %v890, 0.0
    %895 = vadd.xlane.f32.xlu0 %v894
    %v896 = vpop.xlane.xlu0 %895
    %v897 = vmul.f32 %v893, %v745
    %v898 = vmul.f32 %v896, %v745
    %v899 = vadd.f32 %v897, 1e-05
    %v900 = vadd.f32 %v898, 1e-05
    %v901 = vrsqrt.pop %v899
    %v902 = vmul.f32 %v901, %v899
    %v903 = vmul.f32 %v902, %v901
    %v904 = vmul.f32 0.5, %v903
    %v905 = vsub.f32 1.5, %v904
    %v906 = vmul.f32 %v901, %v905
    %vm907 = vweird.f32 %v899
    %vm908 = vweird.f32 %v901
    %vm909 = vmor %vm907, %vm908
    %v910 = vsel %vm909, %v901, %v906
    %v911 = vrsqrt.pop %v900
    %v912 = vmul.f32 %v911, %v900
    %v913 = vmul.f32 %v912, %v911
    %v914 = vmul.f32 0.5, %v913
    %v915 = vsub.f32 1.5, %v914
    %v916 = vmul.f32 %v911, %v915
    %vm917 = vweird.f32 %v900
    %vm918 = vweird.f32 %v911
    %vm919 = vmor %vm917, %vm918
    %v920 = vsel %vm919, %v911, %v916
    %v921 = vmul.f32 %v887, %v910
    %v922 = vmul.f32 %v888, %v920
    %v924 = vperm.slane %v877, 0
    %v926 = vmul.f32 %v921, %v924
    %v927 = vmul.f32 %v922, %v924
    %v929 = vperm.slane %v878, 0
    %v931 = vadd.f32 %v926, %v929
    %v932 = vadd.f32 %v927, %v929
    %v933 = vld [vmem:[%s13] sm:$0x1]
    %v934 = vld [vmem:[%s14] sm:$0x1]
    %v935 = vsel %vm124, %v931, 0.0
    %936 = vadd.xlane.f32.xlu0 %v935
    %v937 = vpop.xlane.xlu0 %936
    %v938 = vsel %vm124, %v932, 0.0
    %939 = vadd.xlane.f32.xlu0 %v938
    %v940 = vpop.xlane.xlu0 %939
    %v941 = vmul.f32 %v937, %v745
    %v942 = vmul.f32 %v940, %v745
    %v943 = vsub.f32 %v931, %v941
    %v944 = vsub.f32 %v932, %v942
    %v945 = vmul.f32 %v943, %v943
    %v946 = vmul.f32 %v944, %v944
    %v947 = vsel %vm124, %v945, 0.0
    %948 = vadd.xlane.f32.xlu0 %v947
    %v949 = vpop.xlane.xlu0 %948
    %v950 = vsel %vm124, %v946, 0.0
    %951 = vadd.xlane.f32.xlu0 %v950
    %v952 = vpop.xlane.xlu0 %951
    %v953 = vmul.f32 %v949, %v745
    %v954 = vmul.f32 %v952, %v745
    %v955 = vadd.f32 %v953, 1e-05
    %v956 = vadd.f32 %v954, 1e-05
    %v957 = vrsqrt.pop %v955
    %v958 = vmul.f32 %v957, %v955
    %v959 = vmul.f32 %v958, %v957
    %v960 = vmul.f32 0.5, %v959
    %v961 = vsub.f32 1.5, %v960
    %v962 = vmul.f32 %v957, %v961
    %vm963 = vweird.f32 %v955
    %vm964 = vweird.f32 %v957
    %vm965 = vmor %vm963, %vm964
    %v966 = vsel %vm965, %v957, %v962
    %v967 = vrsqrt.pop %v956
    %v968 = vmul.f32 %v967, %v956
    %v969 = vmul.f32 %v968, %v967
    %v970 = vmul.f32 0.5, %v969
    %v971 = vsub.f32 1.5, %v970
    %v972 = vmul.f32 %v967, %v971
    %vm973 = vweird.f32 %v956
    %vm974 = vweird.f32 %v967
    %vm975 = vmor %vm973, %vm974
    %v976 = vsel %vm975, %v967, %v972
    %v977 = vmul.f32 %v943, %v966
    %v978 = vmul.f32 %v944, %v976
    %v980 = vperm.slane %v933, 0
    %v982 = vmul.f32 %v977, %v980
    %v983 = vmul.f32 %v978, %v980
    %v985 = vperm.slane %v934, 0
    %v987 = vadd.f32 %v982, %v985
    %v988 = vadd.f32 %v983, %v985
    %989 = vst.msk [vmem:[#allocation10] sm:$0xff] %vm124, %v987
    %990 = vst.msk [vmem:[#allocation10 + $0x8] sm:$0xff] %vm124, %v988
    // Predicated region
    $region78: #{pulse_encoder_forward.5} parent=1 // pred_check
      _
    $region79: #{pulse_encoder_forward.5} parent=1 // pred_check_branch
      %992 = sbr.rel (0) target = $region81
    $region80: #{pulse_encoder_forward.5} parent=1 // pred_region
      %994 = vsyncadd [#allocation4], 0
      %s995 = sshll.u32 [#allocation10], 4
      %s996 = int_to_ptr.vmem [resolvable:$true] %s995
      %s997 = sshll.u32 %s15, 4
      %s998 = int_to_ptr.hbm [resolvable:$true] %s997
      %1003 = dma.vmem_to_hbm [thread:$0]  %s996, 256, %s998, [#allocation4], 128, 128, 8
    $region81: #{pulse_encoder_forward.5} parent=1 // pred_fallthru
      _
    // Predicated region
    $region82: #{pulse_encoder_forward.5} parent=1 // pred_check
      _
    $region83: #{pulse_encoder_forward.5} parent=1 // pred_check_branch
      %1005 = sbr.rel (0) target = $region85
    $region84: #{pulse_encoder_forward.5} parent=1 // pred_region
      %1007 = dma.done [#allocation4], 256
    $region85: #{pulse_encoder_forward.5} parent=1 // pred_fallthru
      _
    %1008 = vsyncpa [#allocation3], 1
    %1009 = vsyncpa [#allocation6], 1
    %1010 = vsyncpa [#allocation9], 1
    %1011 = vsyncpa [#allocation4], 1

// kernel: pulse_encoder_forward.4
$region0: #{pulse_encoder_forward.4}
  #allocation0 [shape = 'u32[]', space=smem, size = 0x4, offset = 0x4, fixed_abs, tag = 'smem constant byte address 0x4 - core index']
  #allocation1 [shape = 'u32[72,128]{1,0:T(1,128)}', space=vmem, size = 0x9000, scoped, tag = 'internal scratch']
  %s0 = inlined_call_operand.vmem [shape: f32[16,32], index: 0, kind: input, shape index: {}]
  %s1 = inlined_call_operand.vmem [shape: f32[32,96], index: 1, kind: input, shape index: {}]
  %s2 = inlined_call_operand.vmem [shape: f32[1,96], index: 2, kind: input, shape index: {}]
  %s3 = inlined_call_operand.hbm [shape: f32[32,32], index: 3, kind: input, shape index: {}]
  %s4 = inlined_call_operand.vmem [shape: f32[1,32], index: 4, kind: input, shape index: {}]
  %s5 = inlined_call_operand.vmem [shape: f32[1,32], index: 5, kind: input, shape index: {}, may-alias: {5,11,13}]
  %s6 = inlined_call_operand.vmem [shape: f32[1,32], index: 6, kind: input, shape index: {}, may-alias: {6,12,14}]
  %s7 = inlined_call_operand.hbm [shape: f32[32,64], index: 7, kind: input, shape index: {}]
  %s8 = inlined_call_operand.vmem [shape: f32[1,64], index: 8, kind: input, shape index: {}]
  %s9 = inlined_call_operand.hbm [shape: f32[64,32], index: 9, kind: input, shape index: {}]
  %s10 = inlined_call_operand.vmem [shape: f32[1,32], index: 10, kind: input, shape index: {}]
  %s11 = inlined_call_operand.vmem [shape: f32[1,32], index: 11, kind: input, shape index: {}, may-alias: {5,11,13}]
  %s12 = inlined_call_operand.vmem [shape: f32[1,32], index: 12, kind: input, shape index: {}, may-alias: {6,12,14}]
  %s13 = inlined_call_operand.vmem [shape: f32[1,32], index: 13, kind: input, shape index: {}, may-alias: {5,11,13}]
  %s14 = inlined_call_operand.vmem [shape: f32[1,32], index: 14, kind: input, shape index: {}, may-alias: {6,12,14}]
  %s15 = inlined_call_operand.vmem [shape: f32[16,32], index: 15, kind: output, shape index: {}]
  %s16 = sld [smem:[#allocation0]]
  $region82: #{pulse_encoder_forward.4} parent=0
    _
  %s18 = ssub.s32 1, %s16
  %s19 = scalar_select 0, %s18, %s16
  $region1: #{pulse_encoder_forward.4} parent=0
    #allocation2 [shape = 'u8[16384]{0}', space=vmem, size = 0x4000, scoped, tag = 'input window, operand 3, single buffered']
    #allocation3 [shape = 's32[1]{0}', space=sflag, size = 0x4, scoped, tag = 'scoped memory for pulse_encoder_forward.4']
    #allocation4 [shape = 'u8[16384]{0}', space=vmem, size = 0x4000, scoped, tag = 'input window, operand 7, single buffered']
    #allocation5 [shape = 's32[1]{0}', space=sflag, size = 0x4, scoped, tag = 'scoped memory for pulse_encoder_forward.4']
    #allocation6 [shape = 'u8[32768]{0}', space=vmem, size = 0x8000, scoped, tag = 'input window, operand 9, single buffered']
    %20 = vsyncpa [#allocation3], 0
    %21 = vsyncpa [#allocation5], 0
    // Predicated region
    $region2: #{pulse_encoder_forward.4} parent=1 // pred_check
      _
    $region3: #{pulse_encoder_forward.4} parent=1 // pred_check_branch
      %23 = sbr.rel (0) target = $region5
    $region4: #{pulse_encoder_forward.4} parent=1 // pred_region
      _
    $region5: #{pulse_encoder_forward.4} parent=1 // pred_fallthru
      _
    // Predicated region
    $region6: #{pulse_encoder_forward.4} parent=1 // pred_check
      _
    $region7: #{pulse_encoder_forward.4} parent=1 // pred_check_branch
      %25 = sbr.rel (0) target = $region9
    $region8: #{pulse_encoder_forward.4} parent=1 // pred_region
      _
    $region9: #{pulse_encoder_forward.4} parent=1 // pred_fallthru
      _
    // Predicated region
    $region10: #{pulse_encoder_forward.4} parent=1 // pred_check
      _
    $region11: #{pulse_encoder_forward.4} parent=1 // pred_check_branch
      %27 = sbr.rel (0) target = $region13
    $region12: #{pulse_encoder_forward.4} parent=1 // pred_region
      _
    $region13: #{pulse_encoder_forward.4} parent=1 // pred_fallthru
      _
    // Predicated region
    $region14: #{pulse_encoder_forward.4} parent=1 // pred_check
      _
    $region15: #{pulse_encoder_forward.4} parent=1 // pred_check_branch
      %29 = sbr.rel (0) target = $region17
    $region16: #{pulse_encoder_forward.4} parent=1 // pred_region
      %31 = vsyncadd [#allocation3], 0
      %s32 = sshll.u32 %s3, 4
      %s33 = int_to_ptr.hbm [resolvable:$true] %s32
      %s34 = sshll.u32 [#allocation2], 4
      %s35 = int_to_ptr.vmem [resolvable:$true] %s34
      %40 = dma.hbm_to_vmem [thread:$0]  %s33, 512, %s35, [#allocation3], 128, 128, 8
    $region17: #{pulse_encoder_forward.4} parent=1 // pred_fallthru
      _
    // Predicated region
    $region18: #{pulse_encoder_forward.4} parent=1 // pred_check
      _
    $region19: #{pulse_encoder_forward.4} parent=1 // pred_check_branch
      %42 = sbr.rel (0) target = $region21
    $region20: #{pulse_encoder_forward.4} parent=1 // pred_region
      _
    $region21: #{pulse_encoder_forward.4} parent=1 // pred_fallthru
      _
    // Predicated region
    $region22: #{pulse_encoder_forward.4} parent=1 // pred_check
      _
    $region23: #{pulse_encoder_forward.4} parent=1 // pred_check_branch
      %44 = sbr.rel (0) target = $region25
    $region24: #{pulse_encoder_forward.4} parent=1 // pred_region
      _
    $region25: #{pulse_encoder_forward.4} parent=1 // pred_fallthru
      _
    // Predicated region
    $region26: #{pulse_encoder_forward.4} parent=1 // pred_check
      _
    $region27: #{pulse_encoder_forward.4} parent=1 // pred_check_branch
      %46 = sbr.rel (0) target = $region29
    $region28: #{pulse_encoder_forward.4} parent=1 // pred_region
      _
    $region29: #{pulse_encoder_forward.4} parent=1 // pred_fallthru
      _
    // Predicated region
    $region30: #{pulse_encoder_forward.4} parent=1 // pred_check
      _
    $region31: #{pulse_encoder_forward.4} parent=1 // pred_check_branch
      %48 = sbr.rel (0) target = $region33
    $region32: #{pulse_encoder_forward.4} parent=1 // pred_region
      %50 = vsyncadd [#allocation5], 0
      %s51 = sshll.u32 %s7, 4
      %s52 = int_to_ptr.hbm [resolvable:$true] %s51
      %s53 = sshll.u32 [#allocation4], 4
      %s54 = int_to_ptr.vmem [resolvable:$true] %s53
      %59 = dma.hbm_to_vmem [thread:$0]  %s52, 512, %s54, [#allocation5], 128, 128, 8
    $region33: #{pulse_encoder_forward.4} parent=1 // pred_fallthru
      _
    // Predicated region
    $region34: #{pulse_encoder_forward.4} parent=1 // pred_check
      _
    $region35: #{pulse_encoder_forward.4} parent=1 // pred_check_branch
      %61 = sbr.rel (0) target = $region37
    $region36: #{pulse_encoder_forward.4} parent=1 // pred_region
      _
    $region37: #{pulse_encoder_forward.4} parent=1 // pred_fallthru
      _
    // Predicated region
    $region38: #{pulse_encoder_forward.4} parent=1 // pred_check
      _
    $region39: #{pulse_encoder_forward.4} parent=1 // pred_check_branch
      %63 = sbr.rel (0) target = $region41
    $region40: #{pulse_encoder_forward.4} parent=1 // pred_region
      %65 = vsyncadd [#allocation5], 0
      %s66 = sshll.u32 %s9, 4
      %s67 = int_to_ptr.hbm [resolvable:$true] %s66
      %s68 = sshll.u32 [#allocation6], 4
      %s69 = int_to_ptr.vmem [resolvable:$true] %s68
      %74 = dma.hbm_to_vmem [thread:$0]  %s67, 1024, %s69, [#allocation5], 128, 128, 8
    $region41: #{pulse_encoder_forward.4} parent=1 // pred_fallthru
      _
    // Predicated region
    $region42: #{pulse_encoder_forward.4} parent=1 // pred_check
      _
    $region43: #{pulse_encoder_forward.4} parent=1 // pred_check_branch
      %76 = sbr.rel (0) target = $region45
    $region44: #{pulse_encoder_forward.4} parent=1 // pred_region
      _
    $region45: #{pulse_encoder_forward.4} parent=1 // pred_fallthru
      _
    // Predicated region
    $region46: #{pulse_encoder_forward.4} parent=1 // pred_check
      _
    $region47: #{pulse_encoder_forward.4} parent=1 // pred_check_branch
      %78 = sbr.rel (0) target = $region49
    $region48: #{pulse_encoder_forward.4} parent=1 // pred_region
      _
    $region49: #{pulse_encoder_forward.4} parent=1 // pred_fallthru
      _
    // Predicated region
    $region50: #{pulse_encoder_forward.4} parent=1 // pred_check
      _
    $region51: #{pulse_encoder_forward.4} parent=1 // pred_check_branch
      %80 = sbr.rel (0) target = $region53
    $region52: #{pulse_encoder_forward.4} parent=1 // pred_region
      _
    $region53: #{pulse_encoder_forward.4} parent=1 // pred_fallthru
      _
    // Predicated region
    $region54: #{pulse_encoder_forward.4} parent=1 // pred_check
      _
    $region55: #{pulse_encoder_forward.4} parent=1 // pred_check_branch
      %82 = sbr.rel (0) target = $region57
    $region56: #{pulse_encoder_forward.4} parent=1 // pred_region
      _
    $region57: #{pulse_encoder_forward.4} parent=1 // pred_fallthru
      _
    // Predicated region
    $region58: #{pulse_encoder_forward.4} parent=1 // pred_check
      _
    $region59: #{pulse_encoder_forward.4} parent=1 // pred_check_branch
      %84 = sbr.rel (0) target = $region61
    $region60: #{pulse_encoder_forward.4} parent=1 // pred_region
      _
    $region61: #{pulse_encoder_forward.4} parent=1 // pred_fallthru
      _
    // Predicated region
    $region62: #{pulse_encoder_forward.4} parent=1 // pred_check
      _
    $region63: #{pulse_encoder_forward.4} parent=1 // pred_check_branch
      %86 = sbr.rel (0) target = $region65
    $region64: #{pulse_encoder_forward.4} parent=1 // pred_region
      %88 = dma.done [#allocation3], 512
    $region65: #{pulse_encoder_forward.4} parent=1 // pred_fallthru
      _
    // Predicated region
    $region66: #{pulse_encoder_forward.4} parent=1 // pred_check
      _
    $region67: #{pulse_encoder_forward.4} parent=1 // pred_check_branch
      %90 = sbr.rel (0) target = $region69
    $region68: #{pulse_encoder_forward.4} parent=1 // pred_region
      %92 = dma.done [#allocation5], 512
    $region69: #{pulse_encoder_forward.4} parent=1 // pred_fallthru
      _
    // Predicated region
    $region70: #{pulse_encoder_forward.4} parent=1 // pred_check
      _
    $region71: #{pulse_encoder_forward.4} parent=1 // pred_check_branch
      %94 = sbr.rel (0) target = $region73
    $region72: #{pulse_encoder_forward.4} parent=1 // pred_region
      %96 = dma.done [#allocation5], 1024
    $region73: #{pulse_encoder_forward.4} parent=1 // pred_fallthru
      _
    %v97 = vld [vmem:[%s0] sm:$0xff]
    %v98 = vld [vmem:[%s0 + $0x8] sm:$0xff]
    %v99 = vld [vmem:[%s1] sm:$0xff]
    %v100 = vld [vmem:[%s1 + $0x8] sm:$0xff]
    %v101 = vld [vmem:[%s1 + $0x10] sm:$0xff]
    %v102 = vld [vmem:[%s1 + $0x18] sm:$0xff]
    %v103 = vld [vmem:[%s2] sm:$0x1]
    %v105 = vperm.slane %v103, 0
    %vm107 = vcmask 261120
    %v109 = vsel %vm107, %v97, 0
    %v112 = vsel %vm107, %v98, 0
    %114 = vmatpush.msra.mxu0 0.0
    %115 = vmatpush.msra.mxu0 0.0
    %116 = vmatpush.msra.mxu0 0.0
    %117 = vmatpush.msra.mxu0 0.0
    %118 = vmatpush.msra.mxu0 0.0
    %119 = vmatpush.msra.mxu0 0.0
    %120 = vmatpush.msra.mxu0 0.0
    %121 = vmatpush.msra.mxu0 0.0
    %122 = vmatpush.msra.mxu0 0.0
    %123 = vmatpush.msra.mxu0 0.0
    %124 = vmatpush.msra.mxu0 0.0
    %125 = vmatpush.msra.mxu0 0.0
    %126 = vmatpush.msra.mxu0 %v102
    %127 = vmatpush.msra.mxu0 %v101
    %128 = vmatpush.msra.mxu0 %v100
    %129 = vmatpush.msra.mxu0 %v99
    %130 = vmatmul.f32.gmra.mxu0 %v109
    %v131 = vpop.f32.mrf.mxu0
    %v132 = vadd.f32 %v105, %v131
    %133 = vmatmul.f32.gmra.mxu0 %v112
    %v134 = vpop.f32.mrf.mxu0
    %v135 = vadd.f32 %v105, %v134
    %136 = vdwg.mxu0
    %v137 = vlaneseq
    %v138 = vshrl.u32 %v137, 7
    %v139 = vadd.s32 %v138, 8
    %v140 = vlaneseq
    %v141 = vand.u32 %v140, 127
    %vm142 = vcmp.lt.s32.totalorder %v138, 0
    %v143 = vsub.s32 0, %v138
    %v144 = vsel %vm142, %v143, %v138
    %v145 = vshrl.u32 %v144, 1
    %v146 = vand.u32 %v144, 1
    %v147 = vsub.s32 0, %v146
    %v148 = vsel %vm142, %v147, %v146
    %vm149 = vcmp.lt.s32.totalorder %v139, 0
    %v150 = vsub.s32 0, %v139
    %v151 = vsel %vm149, %v150, %v139
    %v152 = vshrl.u32 %v151, 1
    %v153 = vand.u32 %v151, 1
    %v154 = vsub.s32 0, %v153
    %v155 = vsel %vm149, %v154, %v153
    %vm156 = vcmp.ne.s32.totalorder %v148, 0
    %vm157 = vcmp.ne.s32.totalorder %v155, 0
    %vm158 = vcmp.lt.s32.totalorder %v148, 0
    %vm159 = vcmp.lt.s32.totalorder %v155, 0
    %vm160 = vmand %vm158, %vm156
    %vm161 = vmand %vm159, %vm157
    %v162 = vadd.s32 %v148, 2
    %v163 = vadd.s32 %v155, 2
    %v164 = vsel %vm160, %v162, %v148
    %v165 = vsel %vm161, %v163, %v155
    %vm166 = vcmp.lt.s32.totalorder %v141, 0
    %v167 = vsub.s32 0, %v141
    %v168 = vsel %vm166, %v167, %v141
    %v169 = vshrl.u32 %v168, 1
    %v170 = vand.u32 %v168, 1
    %v171 = vsub.s32 0, %v170
    %v172 = vsel %vm166, %v171, %v170
    %vm173 = vcmp.ne.s32.totalorder %v172, 0
    %vm174 = vcmp.lt.s32.totalorder %v172, 0
    %vm175 = vmand %vm174, %vm173
    %v176 = vadd.s32 %v172, 2
    %v177 = vsel %vm175, %v176, %v172
    %vm178 = vcmp.eq.s32.totalorder %v164, %v177
    %vm179 = vcmp.eq.s32.totalorder %v165, %v177
    %v180 = vld [vmem:[%s4] sm:$0x1]
    %183 = vrot.lane.b32.xlu0 %v132, 96
    %v184 = vpop.permute.xlu0 %183
    %185 = vrot.lane.b32.xlu0 %v135, 96
    %v186 = vpop.permute.xlu0 %185
    %vm187 = vcmask 64512
    %v188 = vsel %vm187, %v132, 0
    %v190 = vsel %vm187, %v135, 0
    %v192 = vsel %vm187, %v184, 0
    %v194 = vsel %vm187, %v186, 0
    %196 = vmatpush.xpose.msra.mxu0 0.0
    %197 = vmatpush.xpose.msra.mxu0 0.0
    %198 = vmatpush.xpose.msra.mxu0 0.0
    %199 = vmatpush.xpose.msra.mxu0 0.0
    %200 = vmatpush.xpose.msra.mxu0 0.0
    %201 = vmatpush.xpose.msra.mxu0 0.0
    %202 = vmatpush.xpose.msra.mxu0 0.0
    %203 = vmatpush.xpose.msra.mxu0 0.0
    %204 = vmatpush.xpose.msra.mxu0 0.0
    %205 = vmatpush.xpose.msra.mxu0 0.0
    %206 = vmatpush.xpose.msra.mxu0 0.0
    %207 = vmatpush.xpose.msra.mxu0 0.0
    %208 = vmatpush.xpose.msra.mxu0 0.0
    %209 = vmatpush.xpose.msra.mxu0 0.0
    %210 = vmatpush.xpose.msra.mxu0 %v194
    %211 = vmatpush.xpose.msra.mxu0 %v192
    %212 = vmatmul.f32.gmra.mxu0 %v188
    %v213 = vpop.f32.mrf.mxu0
    %v214 = vadd.f32 0.0, %v213
    %215 = vmatmul.f32.gmra.mxu0 %v190
    %v216 = vpop.f32.mrf.mxu0
    %v217 = vadd.f32 0.0, %v216
    %218 = vdwg.mxu0
    %v219 = vmul.f32 %v214, 0.35355338
    %v220 = vmul.f32 %v217, 0.35355338
    %v221 = vsel %vm178, %v219, -1e+30
    %v222 = vsel %vm179, %v220, -1e+30
    %vm223 = vcmask 130048
    %v224 = vsel %vm223, %v221, -inf
    %225 = vmax.xlane.f32.xlu0 %v224
    %v226 = vpop.xlane.xlu0 %225
    %v227 = vsel %vm223, %v222, -inf
    %228 = vmax.xlane.f32.xlu0 %v227
    %v229 = vpop.xlane.xlu0 %228
    %v230 = vsub.f32 %v221, %v226
    %v231 = vsub.f32 %v222, %v229
    %v232 = vmul.f32 %v230, 1.442695
    %v233 = vpow.pop %v232
    %v234 = vmul.f32 %v231, 1.442695
    %v235 = vpow.pop %v234
    %v236 = vsel %vm223, %v233, 0.0
    %237 = vadd.xlane.f32.xlu0 %v236
    %v238 = vpop.xlane.xlu0 %237
    %v239 = vsel %vm223, %v235, 0.0
    %240 = vadd.xlane.f32.xlu0 %v239
    %v241 = vpop.xlane.xlu0 %240
    %v242 = vrcp.pop %v238
    %v243 = vrcp.pop %v241
    %v244 = vmul.f32 %v233, %v242
    %v245 = vmul.f32 %v235, %v243
    %246 = vrot.lane.b32.xlu0 %v132, 64
    %v247 = vpop.permute.xlu0 %246
    %248 = vrot.lane.b32.xlu0 %v135, 64
    %v249 = vpop.permute.xlu0 %248
    %v253 = vsel %vm223, %v244, 0
    %v256 = vsel %vm223, %v245, 0
    %258 = vmatpush.msra.mxu0 0.0
    %259 = vmatpush.msra.mxu0 0.0
    %260 = vmatpush.msra.mxu0 0.0
    %261 = vmatpush.msra.mxu0 0.0
    %262 = vmatpush.msra.mxu0 0.0
    %263 = vmatpush.msra.mxu0 0.0
    %264 = vmatpush.msra.mxu0 0.0
    %265 = vmatpush.msra.mxu0 0.0
    %266 = vmatpush.msra.mxu0 0.0
    %267 = vmatpush.msra.mxu0 0.0
    %268 = vmatpush.msra.mxu0 0.0
    %269 = vmatpush.msra.mxu0 0.0
    %270 = vmatpush.msra.mxu0 0.0
    %271 = vmatpush.msra.mxu0 0.0
    %272 = vmatpush.msra.mxu0 %v249
    %273 = vmatpush.msra.mxu0 %v247
    %274 = vmatmul.f32.gmra.mxu0 %v253
    %v275 = vpop.f32.mrf.mxu0
    %v276 = vadd.f32 0.0, %v275
    %277 = vmatmul.f32.gmra.mxu0 %v256
    %v278 = vpop.f32.mrf.mxu0
    %v279 = vadd.f32 0.0, %v278
    %280 = vdwg.mxu0
    %v281 = vld [vmem:[#allocation2] sm:$0xff]
    %v283 = vsel %vm187, %v276, 0
    %v286 = vsel %vm187, %v279, 0
    %288 = vmatpush.msra.mxu0 0.0
    %289 = vmatpush.msra.mxu0 0.0
    %290 = vmatpush.msra.mxu0 0.0
    %291 = vmatpush.msra.mxu0 0.0
    %292 = vmatpush.msra.mxu0 0.0
    %293 = vmatpush.msra.mxu0 0.0
    %294 = vmatpush.msra.mxu0 0.0
    %295 = vmatpush.msra.mxu0 0.0
    %296 = vmatpush.msra.mxu0 0.0
    %297 = vmatpush.msra.mxu0 0.0
    %298 = vmatpush.msra.mxu0 0.0
    %299 = vmatpush.msra.mxu0 0.0
    %300 = vmatpush.msra.mxu0 0.0
    %301 = vmatpush.msra.mxu0 0.0
    %302 = vmatpush.msra.mxu0 0.0
    %303 = vmatpush.msra.mxu0 %v281
    %304 = vmatmul.f32.gmra.mxu0 %v283
    %v305 = vpop.f32.mrf.mxu0
    %v306 = vadd.f32 0.0, %v305
    %307 = vmatmul.f32.gmra.mxu0 %v286
    %v308 = vpop.f32.mrf.mxu0
    %v309 = vadd.f32 0.0, %v308
    %310 = vdwg.mxu0
    %v312 = vperm.slane %v180, 0
    %v314 = vadd.f32 %v312, %v306
    %v315 = vadd.f32 %v312, %v309
    %316 = vrot.lane.b32.xlu0 %v132, 120
    %v317 = vpop.permute.xlu0 %316
    %318 = vrot.lane.b32.xlu0 %v135, 120
    %v319 = vpop.permute.xlu0 %318
    %320 = vrot.lane.b32.xlu0 %v132, 88
    %v321 = vpop.permute.xlu0 %320
    %322 = vrot.lane.b32.xlu0 %v135, 88
    %v323 = vpop.permute.xlu0 %322
    %v324 = vsel %vm187, %v317, 0
    %v326 = vsel %vm187, %v319, 0
    %v328 = vsel %vm187, %v321, 0
    %v330 = vsel %vm187, %v323, 0
    %332 = vmatpush.xpose.msra.mxu0 0.0
    %333 = vmatpush.xpose.msra.mxu0 0.0
    %334 = vmatpush.xpose.msra.mxu0 0.0
    %335 = vmatpush.xpose.msra.mxu0 0.0
    %336 = vmatpush.xpose.msra.mxu0 0.0
    %337 = vmatpush.xpose.msra.mxu0 0.0
    %338 = vmatpush.xpose.msra.mxu0 0.0
    %339 = vmatpush.xpose.msra.mxu0 0.0
    %340 = vmatpush.xpose.msra.mxu0 0.0
    %341 = vmatpush.xpose.msra.mxu0 0.0
    %342 = vmatpush.xpose.msra.mxu0 0.0
    %343 = vmatpush.xpose.msra.mxu0 0.0
    %344 = vmatpush.xpose.msra.mxu0 0.0
    %345 = vmatpush.xpose.msra.mxu0 0.0
    %346 = vmatpush.xpose.msra.mxu0 %v330
    %347 = vmatpush.xpose.msra.mxu0 %v328
    %348 = vmatmul.f32.gmra.mxu0 %v324
    %v349 = vpop.f32.mrf.mxu0
    %v350 = vadd.f32 0.0, %v349
    %351 = vmatmul.f32.gmra.mxu0 %v326
    %v352 = vpop.f32.mrf.mxu0
    %v353 = vadd.f32 0.0, %v352
    %354 = vdwg.mxu0
    %v355 = vmul.f32 %v350, 0.35355338
    %v356 = vmul.f32 %v353, 0.35355338
    %v357 = vsel %vm178, %v355, -1e+30
    %v358 = vsel %vm179, %v356, -1e+30
    %v359 = vsel %vm223, %v357, -inf
    %360 = vmax.xlane.f32.xlu0 %v359
    %v361 = vpop.xlane.xlu0 %360
    %v362 = vsel %vm223, %v358, -inf
    %363 = vmax.xlane.f32.xlu0 %v362
    %v364 = vpop.xlane.xlu0 %363
    %v365 = vsub.f32 %v357, %v361
    %v366 = vsub.f32 %v358, %v364
    %v367 = vmul.f32 %v365, 1.442695
    %v368 = vpow.pop %v367
    %v369 = vmul.f32 %v366, 1.442695
    %v370 = vpow.pop %v369
    %v371 = vsel %vm223, %v368, 0.0
    %372 = vadd.xlane.f32.xlu0 %v371
    %v373 = vpop.xlane.xlu0 %372
    %v374 = vsel %vm223, %v370, 0.0
    %375 = vadd.xlane.f32.xlu0 %v374
    %v376 = vpop.xlane.xlu0 %375
    %v377 = vrcp.pop %v373
    %v378 = vrcp.pop %v376
    %v379 = vmul.f32 %v368, %v377
    %v380 = vmul.f32 %v370, %v378
    %381 = vrot.lane.b32.xlu0 %v132, 56
    %v382 = vpop.permute.xlu0 %381
    %383 = vrot.lane.b32.xlu0 %v135, 56
    %v384 = vpop.permute.xlu0 %383
    %v388 = vsel %vm223, %v379, 0
    %v391 = vsel %vm223, %v380, 0
    %393 = vmatpush.msra.mxu0 0.0
    %394 = vmatpush.msra.mxu0 0.0
    %395 = vmatpush.msra.mxu0 0.0
    %396 = vmatpush.msra.mxu0 0.0
    %397 = vmatpush.msra.mxu0 0.0
    %398 = vmatpush.msra.mxu0 0.0
    %399 = vmatpush.msra.mxu0 0.0
    %400 = vmatpush.msra.mxu0 0.0
    %401 = vmatpush.msra.mxu0 0.0
    %402 = vmatpush.msra.mxu0 0.0
    %403 = vmatpush.msra.mxu0 0.0
    %404 = vmatpush.msra.mxu0 0.0
    %405 = vmatpush.msra.mxu0 0.0
    %406 = vmatpush.msra.mxu0 0.0
    %407 = vmatpush.msra.mxu0 %v384
    %408 = vmatpush.msra.mxu0 %v382
    %409 = vmatmul.f32.gmra.mxu0 %v388
    %v410 = vpop.f32.mrf.mxu0
    %v411 = vadd.f32 0.0, %v410
    %412 = vmatmul.f32.gmra.mxu0 %v391
    %v413 = vpop.f32.mrf.mxu0
    %v414 = vadd.f32 0.0, %v413
    %415 = vdwg.mxu0
    %v416 = vld [vmem:[#allocation2 + $0x8] sm:$0xff]
    %v418 = vsel %vm187, %v411, 0
    %v421 = vsel %vm187, %v414, 0
    %423 = vmatpush.msra.mxu0 0.0
    %424 = vmatpush.msra.mxu0 0.0
    %425 = vmatpush.msra.mxu0 0.0
    %426 = vmatpush.msra.mxu0 0.0
    %427 = vmatpush.msra.mxu0 0.0
    %428 = vmatpush.msra.mxu0 0.0
    %429 = vmatpush.msra.mxu0 0.0
    %430 = vmatpush.msra.mxu0 0.0
    %431 = vmatpush.msra.mxu0 0.0
    %432 = vmatpush.msra.mxu0 0.0
    %433 = vmatpush.msra.mxu0 0.0
    %434 = vmatpush.msra.mxu0 0.0
    %435 = vmatpush.msra.mxu0 0.0
    %436 = vmatpush.msra.mxu0 0.0
    %437 = vmatpush.msra.mxu0 0.0
    %438 = vmatpush.msra.mxu0 %v416
    %439 = vmatmul.f32.gmra.mxu0 %v418
    %v440 = vpop.f32.mrf.mxu0
    %v441 = vadd.f32 0.0, %v440
    %442 = vmatmul.f32.gmra.mxu0 %v421
    %v443 = vpop.f32.mrf.mxu0
    %v444 = vadd.f32 0.0, %v443
    %445 = vdwg.mxu0
    %v446 = vadd.f32 %v314, %v441
    %v447 = vadd.f32 %v315, %v444
    %448 = vrot.lane.b32.xlu0 %v132, 112
    %v449 = vpop.permute.xlu0 %448
    %450 = vrot.lane.b32.xlu0 %v135, 112
    %v451 = vpop.permute.xlu0 %450
    %452 = vrot.lane.b32.xlu0 %v132, 80
    %v453 = vpop.permute.xlu0 %452
    %454 = vrot.lane.b32.xlu0 %v135, 80
    %v455 = vpop.permute.xlu0 %454
    %v456 = vsel %vm187, %v449, 0
    %v458 = vsel %vm187, %v451, 0
    %v460 = vsel %vm187, %v453, 0
    %v462 = vsel %vm187, %v455, 0
    %464 = vmatpush.xpose.msra.mxu0 0.0
    %465 = vmatpush.xpose.msra.mxu0 0.0
    %466 = vmatpush.xpose.msra.mxu0 0.0
    %467 = vmatpush.xpose.msra.mxu0 0.0
    %468 = vmatpush.xpose.msra.mxu0 0.0
    %469 = vmatpush.xpose.msra.mxu0 0.0
    %470 = vmatpush.xpose.msra.mxu0 0.0
    %471 = vmatpush.xpose.msra.mxu0 0.0
    %472 = vmatpush.xpose.msra.mxu0 0.0
    %473 = vmatpush.xpose.msra.mxu0 0.0
    %474 = vmatpush.xpose.msra.mxu0 0.0
    %475 = vmatpush.xpose.msra.mxu0 0.0
    %476 = vmatpush.xpose.msra.mxu0 0.0
    %477 = vmatpush.xpose.msra.mxu0 0.0
    %478 = vmatpush.xpose.msra.mxu0 %v462
    %479 = vmatpush.xpose.msra.mxu0 %v460
    %480 = vmatmul.f32.gmra.mxu0 %v456
    %v481 = vpop.f32.mrf.mxu0
    %v482 = vadd.f32 0.0, %v481
    %483 = vmatmul.f32.gmra.mxu0 %v458
    %v484 = vpop.f32.mrf.mxu0
    %v485 = vadd.f32 0.0, %v484
    %486 = vdwg.mxu0
    %v487 = vmul.f32 %v482, 0.35355338
    %v488 = vmul.f32 %v485, 0.35355338
    %v489 = vsel %vm178, %v487, -1e+30
    %v490 = vsel %vm179, %v488, -1e+30
    %v491 = vsel %vm223, %v489, -inf
    %492 = vmax.xlane.f32.xlu0 %v491
    %v493 = vpop.xlane.xlu0 %492
    %v494 = vsel %vm223, %v490, -inf
    %495 = vmax.xlane.f32.xlu0 %v494
    %v496 = vpop.xlane.xlu0 %495
    %v497 = vsub.f32 %v489, %v493
    %v498 = vsub.f32 %v490, %v496
    %v499 = vmul.f32 %v497, 1.442695
    %v500 = vpow.pop %v499
    %v501 = vmul.f32 %v498, 1.442695
    %v502 = vpow.pop %v501
    %v503 = vsel %vm223, %v500, 0.0
    %504 = vadd.xlane.f32.xlu0 %v503
    %v505 = vpop.xlane.xlu0 %504
    %v506 = vsel %vm223, %v502, 0.0
    %507 = vadd.xlane.f32.xlu0 %v506
    %v508 = vpop.xlane.xlu0 %507
    %v509 = vrcp.pop %v505
    %v510 = vrcp.pop %v508
    %v511 = vmul.f32 %v500, %v509
    %v512 = vmul.f32 %v502, %v510
    %513 = vrot.lane.b32.xlu0 %v132, 48
    %v514 = vpop.permute.xlu0 %513
    %515 = vrot.lane.b32.xlu0 %v135, 48
    %v516 = vpop.permute.xlu0 %515
    %v520 = vsel %vm223, %v511, 0
    %v523 = vsel %vm223, %v512, 0
    %525 = vmatpush.msra.mxu0 0.0
    %526 = vmatpush.msra.mxu0 0.0
    %527 = vmatpush.msra.mxu0 0.0
    %528 = vmatpush.msra.mxu0 0.0
    %529 = vmatpush.msra.mxu0 0.0
    %530 = vmatpush.msra.mxu0 0.0
    %531 = vmatpush.msra.mxu0 0.0
    %532 = vmatpush.msra.mxu0 0.0
    %533 = vmatpush.msra.mxu0 0.0
    %534 = vmatpush.msra.mxu0 0.0
    %535 = vmatpush.msra.mxu0 0.0
    %536 = vmatpush.msra.mxu0 0.0
    %537 = vmatpush.msra.mxu0 0.0
    %538 = vmatpush.msra.mxu0 0.0
    %539 = vmatpush.msra.mxu0 %v516
    %540 = vmatpush.msra.mxu0 %v514
    %541 = vmatmul.f32.gmra.mxu0 %v520
    %v542 = vpop.f32.mrf.mxu0
    %v543 = vadd.f32 0.0, %v542
    %544 = vmatmul.f32.gmra.mxu0 %v523
    %v545 = vpop.f32.mrf.mxu0
    %v546 = vadd.f32 0.0, %v545
    %547 = vdwg.mxu0
    %v548 = vld [vmem:[#allocation2 + $0x10] sm:$0xff]
    %v550 = vsel %vm187, %v543, 0
    %v553 = vsel %vm187, %v546, 0
    %555 = vmatpush.msra.mxu0 0.0
    %556 = vmatpush.msra.mxu0 0.0
    %557 = vmatpush.msra.mxu0 0.0
    %558 = vmatpush.msra.mxu0 0.0
    %559 = vmatpush.msra.mxu0 0.0
    %560 = vmatpush.msra.mxu0 0.0
    %561 = vmatpush.msra.mxu0 0.0
    %562 = vmatpush.msra.mxu0 0.0
    %563 = vmatpush.msra.mxu0 0.0
    %564 = vmatpush.msra.mxu0 0.0
    %565 = vmatpush.msra.mxu0 0.0
    %566 = vmatpush.msra.mxu0 0.0
    %567 = vmatpush.msra.mxu0 0.0
    %568 = vmatpush.msra.mxu0 0.0
    %569 = vmatpush.msra.mxu0 0.0
    %570 = vmatpush.msra.mxu0 %v548
    %571 = vmatmul.f32.gmra.mxu0 %v550
    %v572 = vpop.f32.mrf.mxu0
    %v573 = vadd.f32 0.0, %v572
    %574 = vmatmul.f32.gmra.mxu0 %v553
    %v575 = vpop.f32.mrf.mxu0
    %v576 = vadd.f32 0.0, %v575
    %577 = vdwg.mxu0
    %v578 = vadd.f32 %v446, %v573
    %v579 = vadd.f32 %v447, %v576
    %580 = vrot.lane.b32.xlu0 %v132, 104
    %v581 = vpop.permute.xlu0 %580
    %582 = vrot.lane.b32.xlu0 %v135, 104
    %v583 = vpop.permute.xlu0 %582
    %584 = vrot.lane.b32.xlu0 %v132, 72
    %v585 = vpop.permute.xlu0 %584
    %586 = vrot.lane.b32.xlu0 %v135, 72
    %v587 = vpop.permute.xlu0 %586
    %v588 = vsel %vm187, %v581, 0
    %v590 = vsel %vm187, %v583, 0
    %v592 = vsel %vm187, %v585, 0
    %v594 = vsel %vm187, %v587, 0
    %596 = vmatpush.xpose.msra.mxu0 0.0
    %597 = vmatpush.xpose.msra.mxu0 0.0
    %598 = vmatpush.xpose.msra.mxu0 0.0
    %599 = vmatpush.xpose.msra.mxu0 0.0
    %600 = vmatpush.xpose.msra.mxu0 0.0
    %601 = vmatpush.xpose.msra.mxu0 0.0
    %602 = vmatpush.xpose.msra.mxu0 0.0
    %603 = vmatpush.xpose.msra.mxu0 0.0
    %604 = vmatpush.xpose.msra.mxu0 0.0
    %605 = vmatpush.xpose.msra.mxu0 0.0
    %606 = vmatpush.xpose.msra.mxu0 0.0
    %607 = vmatpush.xpose.msra.mxu0 0.0
    %608 = vmatpush.xpose.msra.mxu0 0.0
    %609 = vmatpush.xpose.msra.mxu0 0.0
    %610 = vmatpush.xpose.msra.mxu0 %v594
    %611 = vmatpush.xpose.msra.mxu0 %v592
    %612 = vmatmul.f32.gmra.mxu0 %v588
    %v613 = vpop.f32.mrf.mxu0
    %v614 = vadd.f32 0.0, %v613
    %615 = vmatmul.f32.gmra.mxu0 %v590
    %v616 = vpop.f32.mrf.mxu0
    %v617 = vadd.f32 0.0, %v616
    %618 = vdwg.mxu0
    %v619 = vmul.f32 %v614, 0.35355338
    %v620 = vmul.f32 %v617, 0.35355338
    %v621 = vsel %vm178, %v619, -1e+30
    %v622 = vsel %vm179, %v620, -1e+30
    %v623 = vsel %vm223, %v621, -inf
    %624 = vmax.xlane.f32.xlu0 %v623
    %v625 = vpop.xlane.xlu0 %624
    %v626 = vsel %vm223, %v622, -inf
    %627 = vmax.xlane.f32.xlu0 %v626
    %v628 = vpop.xlane.xlu0 %627
    %v629 = vsub.f32 %v621, %v625
    %v630 = vsub.f32 %v622, %v628
    %v631 = vmul.f32 %v629, 1.442695
    %v632 = vpow.pop %v631
    %v633 = vmul.f32 %v630, 1.442695
    %v634 = vpow.pop %v633
    %v635 = vsel %vm223, %v632, 0.0
    %636 = vadd.xlane.f32.xlu0 %v635
    %v637 = vpop.xlane.xlu0 %636
    %v638 = vsel %vm223, %v634, 0.0
    %639 = vadd.xlane.f32.xlu0 %v638
    %v640 = vpop.xlane.xlu0 %639
    %v641 = vrcp.pop %v637
    %v642 = vrcp.pop %v640
    %v643 = vmul.f32 %v632, %v641
    %v644 = vmul.f32 %v634, %v642
    %645 = vrot.lane.b32.xlu0 %v132, 40
    %v646 = vpop.permute.xlu0 %645
    %647 = vrot.lane.b32.xlu0 %v135, 40
    %v648 = vpop.permute.xlu0 %647
    %v652 = vsel %vm223, %v643, 0
    %v655 = vsel %vm223, %v644, 0
    %657 = vmatpush.msra.mxu0 0.0
    %658 = vmatpush.msra.mxu0 0.0
    %659 = vmatpush.msra.mxu0 0.0
    %660 = vmatpush.msra.mxu0 0.0
    %661 = vmatpush.msra.mxu0 0.0
    %662 = vmatpush.msra.mxu0 0.0
    %663 = vmatpush.msra.mxu0 0.0
    %664 = vmatpush.msra.mxu0 0.0
    %665 = vmatpush.msra.mxu0 0.0
    %666 = vmatpush.msra.mxu0 0.0
    %667 = vmatpush.msra.mxu0 0.0
    %668 = vmatpush.msra.mxu0 0.0
    %669 = vmatpush.msra.mxu0 0.0
    %670 = vmatpush.msra.mxu0 0.0
    %671 = vmatpush.msra.mxu0 %v648
    %672 = vmatpush.msra.mxu0 %v646
    %673 = vmatmul.f32.gmra.mxu0 %v652
    %v674 = vpop.f32.mrf.mxu0
    %v675 = vadd.f32 0.0, %v674
    %676 = vmatmul.f32.gmra.mxu0 %v655
    %v677 = vpop.f32.mrf.mxu0
    %v678 = vadd.f32 0.0, %v677
    %679 = vdwg.mxu0
    %v680 = vld [vmem:[#allocation2 + $0x18] sm:$0xff]
    %v682 = vsel %vm187, %v675, 0
    %v685 = vsel %vm187, %v678, 0
    %687 = vmatpush.msra.mxu0 0.0
    %688 = vmatpush.msra.mxu0 0.0
    %689 = vmatpush.msra.mxu0 0.0
    %690 = vmatpush.msra.mxu0 0.0
    %691 = vmatpush.msra.mxu0 0.0
    %692 = vmatpush.msra.mxu0 0.0
    %693 = vmatpush.msra.mxu0 0.0
    %694 = vmatpush.msra.mxu0 0.0
    %695 = vmatpush.msra.mxu0 0.0
    %696 = vmatpush.msra.mxu0 0.0
    %697 = vmatpush.msra.mxu0 0.0
    %698 = vmatpush.msra.mxu0 0.0
    %699 = vmatpush.msra.mxu0 0.0
    %700 = vmatpush.msra.mxu0 0.0
    %701 = vmatpush.msra.mxu0 0.0
    %702 = vmatpush.msra.mxu0 %v680
    %703 = vmatmul.f32.gmra.mxu0 %v682
    %v704 = vpop.f32.mrf.mxu0
    %v705 = vadd.f32 0.0, %v704
    %706 = vmatmul.f32.gmra.mxu0 %v685
    %v707 = vpop.f32.mrf.mxu0
    %v708 = vadd.f32 0.0, %v707
    %709 = vdwg.mxu0
    %v710 = vadd.f32 %v578, %v705
    %v711 = vadd.f32 %v579, %v708
    %v712 = vadd.f32 %v97, %v710
    %v713 = vadd.f32 %v98, %v711
    %v714 = vld [vmem:[%s5] sm:$0x1]
    %v715 = vld [vmem:[%s6] sm:$0x1]
    %v716 = vsel %vm107, %v712, 0.0
    %717 = vadd.xlane.f32.xlu0 %v716
    %v718 = vpop.xlane.xlu0 %717
    %v719 = vsel %vm107, %v713, 0.0
    %720 = vadd.xlane.f32.xlu0 %v719
    %v721 = vpop.xlane.xlu0 %720
    %v722 = vrcp.pop 32.0
    %v723 = vmul.f32 32.0, %v722
    %v724 = vsub.f32 1.0, %v723
    %v725 = vmul.f32 %v722, %v724
    %v726 = vadd.f32 %v722, %v725
    %vm727 = vweird.f32 %v722
    %v728 = vsel %vm727, %v722, %v726
    %v729 = vmul.f32 %v718, %v728
    %v730 = vmul.f32 %v721, %v728
    %v731 = vsub.f32 %v712, %v729
    %v732 = vsub.f32 %v713, %v730
    %v733 = vmul.f32 %v731, %v731
    %v734 = vmul.f32 %v732, %v732
    %v735 = vsel %vm107, %v733, 0.0
    %736 = vadd.xlane.f32.xlu0 %v735
    %v737 = vpop.xlane.xlu0 %736
    %v738 = vsel %vm107, %v734, 0.0
    %739 = vadd.xlane.f32.xlu0 %v738
    %v740 = vpop.xlane.xlu0 %739
    %v741 = vmul.f32 %v737, %v728
    %v742 = vmul.f32 %v740, %v728
    %v743 = vadd.f32 %v741, 1e-05
    %v744 = vadd.f32 %v742, 1e-05
    %v745 = vrsqrt.pop %v743
    %v746 = vmul.f32 %v745, %v743
    %v747 = vmul.f32 %v746, %v745
    %v748 = vmul.f32 0.5, %v747
    %v749 = vsub.f32 1.5, %v748
    %v750 = vmul.f32 %v745, %v749
    %vm751 = vweird.f32 %v743
    %vm752 = vweird.f32 %v745
    %vm753 = vmor %vm751, %vm752
    %v754 = vsel %vm753, %v745, %v750
    %v755 = vrsqrt.pop %v744
    %v756 = vmul.f32 %v755, %v744
    %v757 = vmul.f32 %v756, %v755
    %v758 = vmul.f32 0.5, %v757
    %v759 = vsub.f32 1.5, %v758
    %v760 = vmul.f32 %v755, %v759
    %vm761 = vweird.f32 %v744
    %vm762 = vweird.f32 %v755
    %vm763 = vmor %vm761, %vm762
    %v764 = vsel %vm763, %v755, %v760
    %v765 = vmul.f32 %v731, %v754
    %v766 = vmul.f32 %v732, %v764
    %v768 = vperm.slane %v714, 0
    %v770 = vmul.f32 %v765, %v768
    %v771 = vmul.f32 %v766, %v768
    %v773 = vperm.slane %v715, 0
    %v775 = vadd.f32 %v770, %v773
    %v776 = vadd.f32 %v771, %v773
    %v777 = vld [vmem:[#allocation4] sm:$0xff]
    %v778 = vld [vmem:[#allocation4 + $0x8] sm:$0xff]
    %v779 = vld [vmem:[#allocation4 + $0x10] sm:$0xff]
    %v780 = vld [vmem:[#allocation4 + $0x18] sm:$0xff]
    %v781 = vld [vmem:[%s8] sm:$0x1]
    %v783 = vperm.slane %v781, 0
    %v786 = vsel %vm107, %v775, 0
    %v789 = vsel %vm107, %v776, 0
    %791 = vmatpush.msra.mxu0 0.0
    %792 = vmatpush.msra.mxu0 0.0
    %793 = vmatpush.msra.mxu0 0.0
    %794 = vmatpush.msra.mxu0 0.0
    %795 = vmatpush.msra.mxu0 0.0
    %796 = vmatpush.msra.mxu0 0.0
    %797 = vmatpush.msra.mxu0 0.0
    %798 = vmatpush.msra.mxu0 0.0
    %799 = vmatpush.msra.mxu0 0.0
    %800 = vmatpush.msra.mxu0 0.0
    %801 = vmatpush.msra.mxu0 0.0
    %802 = vmatpush.msra.mxu0 0.0
    %803 = vmatpush.msra.mxu0 %v780
    %804 = vmatpush.msra.mxu0 %v779
    %805 = vmatpush.msra.mxu0 %v778
    %806 = vmatpush.msra.mxu0 %v777
    %807 = vmatmul.f32.gmra.mxu0 %v786
    %v808 = vpop.f32.mrf.mxu0
    %v809 = vadd.f32 %v783, %v808
    %810 = vmatmul.f32.gmra.mxu0 %v789
    %v811 = vpop.f32.mrf.mxu0
    %v812 = vadd.f32 %v783, %v811
    %813 = vdwg.mxu0
    %v814 = vmax.f32 %v809, 0.0
    %v815 = vmax.f32 %v812, 0.0
    %v816 = vld [vmem:[#allocation6] sm:$0xff]
    %v817 = vld [vmem:[#allocation6 + $0x8] sm:$0xff]
    %v818 = vld [vmem:[#allocation6 + $0x10] sm:$0xff]
    %v819 = vld [vmem:[#allocation6 + $0x18] sm:$0xff]
    %v820 = vld [vmem:[#allocation6 + $0x20] sm:$0xff]
    %v821 = vld [vmem:[#allocation6 + $0x28] sm:$0xff]
    %v822 = vld [vmem:[#allocation6 + $0x30] sm:$0xff]
    %v823 = vld [vmem:[#allocation6 + $0x38] sm:$0xff]
    %v824 = vld [vmem:[%s10] sm:$0x1]
    %v826 = vperm.slane %v824, 0
    %vm828 = vcmask 523264
    %v830 = vsel %vm828, %v814, 0
    %v833 = vsel %vm828, %v815, 0
    %835 = vmatpush.msra.mxu0 0.0
    %836 = vmatpush.msra.mxu0 0.0
    %837 = vmatpush.msra.mxu0 0.0
    %838 = vmatpush.msra.mxu0 0.0
    %839 = vmatpush.msra.mxu0 0.0
    %840 = vmatpush.msra.mxu0 0.0
    %841 = vmatpush.msra.mxu0 0.0
    %842 = vmatpush.msra.mxu0 0.0
    %843 = vmatpush.msra.mxu0 %v823
    %844 = vmatpush.msra.mxu0 %v822
    %845 = vmatpush.msra.mxu0 %v821
    %846 = vmatpush.msra.mxu0 %v820
    %847 = vmatpush.msra.mxu0 %v819
    %848 = vmatpush.msra.mxu0 %v818
    %849 = vmatpush.msra.mxu0 %v817
    %850 = vmatpush.msra.mxu0 %v816
    %851 = vmatmul.f32.gmra.mxu0 %v830
    %v852 = vpop.f32.mrf.mxu0
    %v853 = vadd.f32 %v826, %v852
    %854 = vmatmul.f32.gmra.mxu0 %v833
    %v855 = vpop.f32.mrf.mxu0
    %v856 = vadd.f32 %v826, %v855
    %857 = vdwg.mxu0
    %v858 = vadd.f32 %v775, %v853
    %v859 = vadd.f32 %v776, %v856
    %v860 = vld [vmem:[%s11] sm:$0x1]
    %v861 = vld [vmem:[%s12] sm:$0x1]
    %v862 = vsel %vm107, %v858, 0.0
    %863 = vadd.xlane.f32.xlu0 %v862
    %v864 = vpop.xlane.xlu0 %863
    %v865 = vsel %vm107, %v859, 0.0
    %866 = vadd.xlane.f32.xlu0 %v865
    %v867 = vpop.xlane.xlu0 %866
    %v868 = vmul.f32 %v864, %v728
    %v869 = vmul.f32 %v867, %v728
    %v870 = vsub.f32 %v858, %v868
    %v871 = vsub.f32 %v859, %v869
    %v872 = vmul.f32 %v870, %v870
    %v873 = vmul.f32 %v871, %v871
    %v874 = vsel %vm107, %v872, 0.0
    %875 = vadd.xlane.f32.xlu0 %v874
    %v876 = vpop.xlane.xlu0 %875
    %v877 = vsel %vm107, %v873, 0.0
    %878 = vadd.xlane.f32.xlu0 %v877
    %v879 = vpop.xlane.xlu0 %878
    %v880 = vmul.f32 %v876, %v728
    %v881 = vmul.f32 %v879, %v728
    %v882 = vadd.f32 %v880, 1e-05
    %v883 = vadd.f32 %v881, 1e-05
    %v884 = vrsqrt.pop %v882
    %v885 = vmul.f32 %v884, %v882
    %v886 = vmul.f32 %v885, %v884
    %v887 = vmul.f32 0.5, %v886
    %v888 = vsub.f32 1.5, %v887
    %v889 = vmul.f32 %v884, %v888
    %vm890 = vweird.f32 %v882
    %vm891 = vweird.f32 %v884
    %vm892 = vmor %vm890, %vm891
    %v893 = vsel %vm892, %v884, %v889
    %v894 = vrsqrt.pop %v883
    %v895 = vmul.f32 %v894, %v883
    %v896 = vmul.f32 %v895, %v894
    %v897 = vmul.f32 0.5, %v896
    %v898 = vsub.f32 1.5, %v897
    %v899 = vmul.f32 %v894, %v898
    %vm900 = vweird.f32 %v883
    %vm901 = vweird.f32 %v894
    %vm902 = vmor %vm900, %vm901
    %v903 = vsel %vm902, %v894, %v899
    %v904 = vmul.f32 %v870, %v893
    %v905 = vmul.f32 %v871, %v903
    %v907 = vperm.slane %v860, 0
    %v909 = vmul.f32 %v904, %v907
    %v910 = vmul.f32 %v905, %v907
    %v912 = vperm.slane %v861, 0
    %v914 = vadd.f32 %v909, %v912
    %v915 = vadd.f32 %v910, %v912
    %916 = vst.msk [vmem:[%s15] sm:$0xff] %vm107, %v914
    %917 = vst.msk [vmem:[%s15 + $0x8] sm:$0xff] %vm107, %v915
    // Predicated region
    $region74: #{pulse_encoder_forward.4} parent=1 // pred_check
      _
    $region75: #{pulse_encoder_forward.4} parent=1 // pred_check_branch
      %919 = sbr.rel (0) target = $region77
    $region76: #{pulse_encoder_forward.4} parent=1 // pred_region
      _
    $region77: #{pulse_encoder_forward.4} parent=1 // pred_fallthru
      _
    // Predicated region
    $region78: #{pulse_encoder_forward.4} parent=1 // pred_check
      _
    $region79: #{pulse_encoder_forward.4} parent=1 // pred_check_branch
      %921 = sbr.rel (0) target = $region81
    $region80: #{pulse_encoder_forward.4} parent=1 // pred_region
      _
    $region81: #{pulse_encoder_forward.4} parent=1 // pred_fallthru
      _
    %922 = vsyncpa [#allocation3], 1
    %923 = vsyncpa [#allocation5], 1

</llo_original>
